<compile_context>
chip_gen: v7x
topology: tpu7x:2x2x1
jax: 0.10.0
libtpu: 0.0.40
codegen_flags: <defaults>
</compile_context>

<pallas_src>
import functools

import jax
import jax.numpy as jnp
import numpy as np
from jax import lax
from jax.experimental import pallas as pl
from jax.experimental.pallas import tpu as pltpu


# Tap order t = (dy+1)*3 + (dx+1)  ==  kh*3 + kw of the OIHW weight.
_OFFSETS = tuple((dy, dx) for dy in (-1, 0, 1) for dx in (-1, 0, 1))


def _generator_kernel(x_ref, mask_ref, w1_ref, b1_ref, w2_ref, b2_ref,
                      out_ref, *, W, NL):
    """Fused conv1 + bias + ReLU + conv2 + bias for one grid step.

    x_ref    : (1, Cp, NL)      input, channel-major (zero-padded to Cp=8),
                                NL = (#images this step) * H * W on lanes
    mask_ref : (9, NL)          0/1 boundary masks per tap (host precomputed)
    w1_ref   : (Cmid, 9*Cp)     conv1 weights, K order [tap, chan]
    b1_ref   : (Cmid, 1)
    w2_ref   : (Cout, 9*Cmid)   conv2 weights, K order [tap, chan]
    b2_ref   : (Cout, 1)
    out_ref  : (1, Cout, NL)
    """
    x = x_ref[0]                # (Cp, NL)  f32
    mask = mask_ref[...]        # (9, NL)   f32, loaded once, reused by both convs

    def build_stack(v):
        """im2col stack (9*C, NL): rolled+masked taps, K order [tap, chan]."""
        taps = []
        for t, (dy, dx) in enumerate(_OFFSETS):
            s = dy * W + dx                       # flat-index shift of this tap
            if s == 0:
                taps.append(v)                    # center tap: always in-bounds
            else:
                # Circular roll (XLU, ~free) brings v[:, n + s] to lane n; the
                # precomputed mask zeroes lanes whose tap falls off the image
                # (also covers wrap-around across folded-image boundaries).
                rolled = pltpu.roll(v, (-s) % NL, 1)
                taps.append(rolled * mask[t:t + 1, :])
        return jnp.concatenate(taps, axis=0)

    # conv1 + bias + ReLU : one K-stacked matmul (Cmid, 9*Cp) x (9*Cp, NL).
    stack1 = build_stack(x)
    h = jnp.dot(w1_ref[...], stack1, preferred_element_type=jnp.float32)
    h = jnp.maximum(h + b1_ref[...], 0.0)         # (Cmid, NL), fused ReLU

    # conv2 + bias : one K-stacked matmul (Cout, 9*Cmid) x (9*Cmid, NL).
    stack2 = build_stack(h)
    y = jnp.dot(w2_ref[...], stack2, preferred_element_type=jnp.float32)
    y = y + b2_ref[...]
    out_ref[0] = y.astype(out_ref.dtype)


def _tensorcores_per_chip():
    """2 on v7x (2 TCs/chip), else 1 (v5e/v6e).  Defaults to 1 on failure."""
    try:
        kind = jax.devices()[0].device_kind.lower()
    except Exception:
        return 1
    return 2 if ("v7" in kind or "7x" in kind) else 1


def _boundary_masks(H, W, NL):
    """(9, NL) 0/1 masks; lane m belongs to image position m mod (H*W)."""
    n = np.arange(NL) % (H * W)
    hp, wp = n // W, n % W
    rows = []
    for dy, dx in _OFFSETS:
        ok = ((hp + dy >= 0) & (hp + dy < H) &
              (wp + dx >= 0) & (wp + dx < W))
        rows.append(ok.astype(np.float32))
    return jnp.asarray(np.stack(rows, axis=0))


def generator_forward(x_nchw, params):
    """Forward pass matching the PyTorch Generator.  Input/output are NCHW."""
    w1, b1, w2, b2 = params          # PyTorch layouts: OIHW weights, (C,) biases
    B, Cin, H, W = x_nchw.shape
    N = H * W
    Cmid = w1.shape[0]
    Cout = w2.shape[0]
    Cp = 8                           # pad Cin -> 8 so im2col taps are sublane-aligned

    # Grid sizing: fold the whole batch into one step on single-TC chips,
    # keep one parallel step per TensorCore on v7x.
    n_tc = _tensorcores_per_chip()
    if n_tc > 1 and B % n_tc == 0:
        bb = B // n_tc               # images per grid step
    else:
        bb = B
    G = B // bb                      # grid length
    NL = bb * N                      # lanes per step (multiple of 128 at 16x16)

    # --- Layout plumbing (tiny XLA ops on <10 KB of data) -------------------
    # Channel-major, flat spatial on lanes, bb images folded per step,
    # channels zero-padded 3 -> 8.
    x_flat = x_nchw.reshape(B, Cin, N)
    x_pad = jnp.pad(x_flat, ((0, 0), (0, Cp - Cin), (0, 0)))
    x_steps = (x_pad.reshape(G, bb, Cp, N)
               .transpose(0, 2, 1, 3)
               .reshape(G, Cp, NL))

    # Weights flattened for the K-stacked matmul, K order [tap, chan].
    w1_flat = jnp.pad(
        jnp.transpose(w1, (0, 2, 3, 1)).reshape(Cmid, 9, Cin),
        ((0, 0), (0, 0), (0, Cp - Cin))).reshape(Cmid, 9 * Cp)
    w2_flat = jnp.transpose(w2, (0, 2, 3, 1)).reshape(Cout, 9 * Cmid)
    b1_c = b1.reshape(Cmid, 1)
    b2_c = b2.reshape(Cout, 1)

    mask = _boundary_masks(H, W, NL)          # (9, NL) compile-time constant

    kernel = functools.partial(_generator_kernel, W=W, NL=NL)

    out_steps = pl.pallas_call(
        kernel,
        out_shape=jax.ShapeDtypeStruct((G, Cout, NL), x_nchw.dtype),
        grid_spec=pltpu.PrefetchScalarGridSpec(
            num_scalar_prefetch=0,
            grid=(G,),
            in_specs=[
                pl.BlockSpec((1, Cp, NL), lambda g: (g, 0, 0)),
                pl.BlockSpec((9, NL), lambda g: (0, 0)),
                pl.BlockSpec((Cmid, 9 * Cp), lambda g: (0, 0)),
                pl.BlockSpec((Cmid, 1), lambda g: (0, 0)),
                pl.BlockSpec((Cout, 9 * Cmid), lambda g: (0, 0)),
                pl.BlockSpec((Cout, 1), lambda g: (0, 0)),
            ],
            out_specs=pl.BlockSpec((1, Cout, NL), lambda g: (g, 0, 0)),
        ),
        compiler_params=pltpu.CompilerParams(
            # Steps are independent images -> shard across TCs on v7x;
            # harmless (single serial step) on v5e/v6e.
            dimension_semantics=("parallel",),
        ),
    )(x_steps, mask, w1_flat, b1_c, w2_flat, b2_c)

    # Unfold lanes back to NCHW.
    return (out_steps.reshape(G, Cout, bb, N)
            .transpose(0, 2, 1, 3)
            .reshape(B, Cout, H, W))
    # TODO(synk): for large H*W add spatial tiling with a 2-row halo and size
    # the tile for v7x's 64 MiB VMEM; unnecessary at 16x16.


def init_params(key):
    """Deterministic synthetic weights in PyTorch layouts (OIHW, (C,) bias)."""
    k1, k2, k3, k4 = jax.random.split(key, 4)
    c_in, c_mid, c_out = 3, 64, 3
    w1 = jax.random.normal(k1, (c_mid, c_in, 3, 3), jnp.float32) * (
        1.0 / np.sqrt(9 * c_in))
    b1 = jax.random.normal(k2, (c_mid,), jnp.float32) * 0.01
    w2 = jax.random.normal(k3, (c_out, c_mid, 3, 3), jnp.float32) * (
        1.0 / np.sqrt(9 * c_mid))
    b2 = jax.random.normal(k4, (c_out,), jnp.float32) * 0.01
    return w1, b1, w2, b2


def _reference_forward(x_nchw, params):
    """Pure-JAX reference (lax.conv) for correctness checking."""
    w1, b1, w2, b2 = params
    dn = ("NCHW", "OIHW", "NCHW")
    h = lax.conv_general_dilated(
        x_nchw, w1, window_strides=(1, 1), padding="SAME",
        dimension_numbers=dn) + b1.reshape(1, -1, 1, 1)
    h = jnp.maximum(h, 0.0)
    y = lax.conv_general_dilated(
        h, w2, window_strides=(1, 1), padding="SAME",
        dimension_numbers=dn) + b2.reshape(1, -1, 1, 1)
    return y


if __name__ == "__main__":
    key = jax.random.PRNGKey(0)
    k_x, k_p = jax.random.split(key)

    # Small deterministic input: batch=2, channels=3 (RGB), 16x16 spatial.
    x = jax.random.normal(k_x, (2, 3, 16, 16), jnp.float32)
    params = init_params(k_p)

    out = jax.block_until_ready(jax.jit(generator_forward)(x, params))
    ref = jax.block_until_ready(_reference_forward(x, params))

    assert out.shape == (2, 3, 16, 16)
    np.testing.assert_allclose(np.asarray(out), np.asarray(ref),
                               atol=1e-4, rtol=1e-4)
    print("KERNEL_OK")
</pallas_src>

<mosaic_0001>
module attributes {stable_mosaic.version = 11 : i64} {
  func.func @_generator_kernel(%arg0: i32, %arg1: memref<1x8x512xf32, #tpu.memory_space<vmem>>, %arg2: memref<9x512xf32, #tpu.memory_space<vmem>>, %arg3: memref<64x72xf32, #tpu.memory_space<vmem>>, %arg4: memref<64x1xf32, #tpu.memory_space<vmem>>, %arg5: memref<3x576xf32, #tpu.memory_space<vmem>>, %arg6: memref<3x1xf32, #tpu.memory_space<vmem>>, %arg7: memref<1x3x512xf32, #tpu.memory_space<vmem>>) attributes {dimension_semantics = [#tpu.dimension_semantics<parallel>], iteration_bounds = array<i64: 1>, scalar_prefetch = 0 : i64, scratch_operands = 0 : i64, tpu.core_type = #tpu.core_type<tc>, window_params = [{transform_indices = @transform_0, window_bounds = array<i64: 1, 8, 512>}, {pipeline_mode = #tpu.pipeline_mode<synchronous>, transform_indices = @transform_1, window_bounds = array<i64: 9, 512>}, {pipeline_mode = #tpu.pipeline_mode<synchronous>, transform_indices = @transform_2, window_bounds = array<i64: 64, 72>}, {pipeline_mode = #tpu.pipeline_mode<synchronous>, transform_indices = @transform_3, window_bounds = array<i64: 64, 1>}, {pipeline_mode = #tpu.pipeline_mode<synchronous>, transform_indices = @transform_4, window_bounds = array<i64: 3, 576>}, {pipeline_mode = #tpu.pipeline_mode<synchronous>, transform_indices = @transform_5, window_bounds = array<i64: 3, 1>}, {transform_indices = @transform_6, window_bounds = array<i64: 1, 3, 512>}]} {
    %c0 = arith.constant 0 : index
    %c0_0 = arith.constant 0 : index
    %c0_1 = arith.constant 0 : index
    %0 = vector.load %arg1[%c0, %c0_0, %c0_1] : memref<1x8x512xf32, #tpu.memory_space<vmem>>, vector<1x8x512xf32>
    %1 = vector.shape_cast %0 : vector<1x8x512xf32> to vector<8x512xf32>
    %c0_2 = arith.constant 0 : index
    %c0_3 = arith.constant 0 : index
    %2 = vector.load %arg2[%c0_2, %c0_3] : memref<9x512xf32, #tpu.memory_space<vmem>>, vector<9x512xf32>
    %c17_i32 = arith.constant 17 : i32
    %3 = tpu.dynamic_rotate %1 by %c17_i32 dim 1 : vector<8x512xf32>, i32 -> vector<8x512xf32>
    %4 = vector.extract_strided_slice %2 {offsets = [0, 0], sizes = [1, 512], strides = [1, 1]} : vector<9x512xf32> to vector<1x512xf32>
    %5 = vector.broadcast %4 : vector<1x512xf32> to vector<8x512xf32>
    %6 = arith.mulf %3, %5 : vector<8x512xf32>
    %c16_i32 = arith.constant 16 : i32
    %7 = tpu.dynamic_rotate %1 by %c16_i32 dim 1 : vector<8x512xf32>, i32 -> vector<8x512xf32>
    %8 = vector.extract_strided_slice %2 {offsets = [1, 0], sizes = [1, 512], strides = [1, 1]} : vector<9x512xf32> to vector<1x512xf32>
    %9 = vector.broadcast %8 : vector<1x512xf32> to vector<8x512xf32>
    %10 = arith.mulf %7, %9 : vector<8x512xf32>
    %c15_i32 = arith.constant 15 : i32
    %11 = tpu.dynamic_rotate %1 by %c15_i32 dim 1 : vector<8x512xf32>, i32 -> vector<8x512xf32>
    %12 = vector.extract_strided_slice %2 {offsets = [2, 0], sizes = [1, 512], strides = [1, 1]} : vector<9x512xf32> to vector<1x512xf32>
    %13 = vector.broadcast %12 : vector<1x512xf32> to vector<8x512xf32>
    %14 = arith.mulf %11, %13 : vector<8x512xf32>
    %c1_i32 = arith.constant 1 : i32
    %15 = tpu.dynamic_rotate %1 by %c1_i32 dim 1 : vector<8x512xf32>, i32 -> vector<8x512xf32>
    %16 = vector.extract_strided_slice %2 {offsets = [3, 0], sizes = [1, 512], strides = [1, 1]} : vector<9x512xf32> to vector<1x512xf32>
    %17 = vector.broadcast %16 : vector<1x512xf32> to vector<8x512xf32>
    %18 = arith.mulf %15, %17 : vector<8x512xf32>
    %c511_i32 = arith.constant 511 : i32
    %19 = tpu.dynamic_rotate %1 by %c511_i32 dim 1 : vector<8x512xf32>, i32 -> vector<8x512xf32>
    %20 = vector.extract_strided_slice %2 {offsets = [5, 0], sizes = [1, 512], strides = [1, 1]} : vector<9x512xf32> to vector<1x512xf32>
    %21 = vector.broadcast %20 : vector<1x512xf32> to vector<8x512xf32>
    %22 = arith.mulf %19, %21 : vector<8x512xf32>
    %c497_i32 = arith.constant 497 : i32
    %23 = tpu.dynamic_rotate %1 by %c497_i32 dim 1 : vector<8x512xf32>, i32 -> vector<8x512xf32>
    %24 = vector.extract_strided_slice %2 {offsets = [6, 0], sizes = [1, 512], strides = [1, 1]} : vector<9x512xf32> to vector<1x512xf32>
    %25 = vector.broadcast %24 : vector<1x512xf32> to vector<8x512xf32>
    %26 = arith.mulf %23, %25 : vector<8x512xf32>
    %c496_i32 = arith.constant 496 : i32
    %27 = tpu.dynamic_rotate %1 by %c496_i32 dim 1 : vector<8x512xf32>, i32 -> vector<8x512xf32>
    %28 = vector.extract_strided_slice %2 {offsets = [7, 0], sizes = [1, 512], strides = [1, 1]} : vector<9x512xf32> to vector<1x512xf32>
    %29 = vector.broadcast %28 : vector<1x512xf32> to vector<8x512xf32>
    %30 = arith.mulf %27, %29 : vector<8x512xf32>
    %c495_i32 = arith.constant 495 : i32
    %31 = tpu.dynamic_rotate %1 by %c495_i32 dim 1 : vector<8x512xf32>, i32 -> vector<8x512xf32>
    %32 = vector.extract_strided_slice %2 {offsets = [8, 0], sizes = [1, 512], strides = [1, 1]} : vector<9x512xf32> to vector<1x512xf32>
    %33 = vector.broadcast %32 : vector<1x512xf32> to vector<8x512xf32>
    %34 = arith.mulf %31, %33 : vector<8x512xf32>
    %35 = tpu.concatenate %6, %10, %14, %18, %1, %22, %26, %30, %34 in 0 : vector<8x512xf32>, vector<8x512xf32>, vector<8x512xf32>, vector<8x512xf32>, vector<8x512xf32>, vector<8x512xf32>, vector<8x512xf32>, vector<8x512xf32>, vector<8x512xf32> -> vector<72x512xf32>
    %c0_4 = arith.constant 0 : index
    %c0_5 = arith.constant 0 : index
    %36 = vector.load %arg3[%c0_4, %c0_5] : memref<64x72xf32, #tpu.memory_space<vmem>>, vector<64x72xf32>
    %cst = arith.constant dense<0.000000e+00> : vector<64x512xf32>
    %37 = tpu.matmul %36, %35, %cst {dimension_numbers = #tpu.dot_dimension_numbers<[1], [0], [0], [1], [0, 0, 1, 1], [], []>} : vector<64x72xf32>, vector<72x512xf32>, vector<64x512xf32> -> vector<64x512xf32>
    %c0_6 = arith.constant 0 : index
    %c0_7 = arith.constant 0 : index
    %38 = vector.load %arg4[%c0_6, %c0_7] : memref<64x1xf32, #tpu.memory_space<vmem>>, vector<64x1xf32>
    %39 = vector.broadcast %38 : vector<64x1xf32> to vector<64x512xf32>
    %40 = arith.addf %37, %39 : vector<64x512xf32>
    %cst_8 = arith.constant 0.000000e+00 : f32
    %41 = vector.broadcast %cst_8 : f32 to vector<64x512xf32>
    %42 = arith.maximumf %40, %41 : vector<64x512xf32>
    %c17_i32_9 = arith.constant 17 : i32
    %43 = tpu.dynamic_rotate %42 by %c17_i32_9 dim 1 : vector<64x512xf32>, i32 -> vector<64x512xf32>
    %44 = vector.extract_strided_slice %2 {offsets = [0, 0], sizes = [1, 512], strides = [1, 1]} : vector<9x512xf32> to vector<1x512xf32>
    %45 = vector.broadcast %44 : vector<1x512xf32> to vector<64x512xf32>
    %46 = arith.mulf %43, %45 : vector<64x512xf32>
    %c16_i32_10 = arith.constant 16 : i32
    %47 = tpu.dynamic_rotate %42 by %c16_i32_10 dim 1 : vector<64x512xf32>, i32 -> vector<64x512xf32>
    %48 = vector.extract_strided_slice %2 {offsets = [1, 0], sizes = [1, 512], strides = [1, 1]} : vector<9x512xf32> to vector<1x512xf32>
    %49 = vector.broadcast %48 : vector<1x512xf32> to vector<64x512xf32>
    %50 = arith.mulf %47, %49 : vector<64x512xf32>
    %c15_i32_11 = arith.constant 15 : i32
    %51 = tpu.dynamic_rotate %42 by %c15_i32_11 dim 1 : vector<64x512xf32>, i32 -> vector<64x512xf32>
    %52 = vector.extract_strided_slice %2 {offsets = [2, 0], sizes = [1, 512], strides = [1, 1]} : vector<9x512xf32> to vector<1x512xf32>
    %53 = vector.broadcast %52 : vector<1x512xf32> to vector<64x512xf32>
    %54 = arith.mulf %51, %53 : vector<64x512xf32>
    %c1_i32_12 = arith.constant 1 : i32
    %55 = tpu.dynamic_rotate %42 by %c1_i32_12 dim 1 : vector<64x512xf32>, i32 -> vector<64x512xf32>
    %56 = vector.extract_strided_slice %2 {offsets = [3, 0], sizes = [1, 512], strides = [1, 1]} : vector<9x512xf32> to vector<1x512xf32>
    %57 = vector.broadcast %56 : vector<1x512xf32> to vector<64x512xf32>
    %58 = arith.mulf %55, %57 : vector<64x512xf32>
    %c511_i32_13 = arith.constant 511 : i32
    %59 = tpu.dynamic_rotate %42 by %c511_i32_13 dim 1 : vector<64x512xf32>, i32 -> vector<64x512xf32>
    %60 = vector.extract_strided_slice %2 {offsets = [5, 0], sizes = [1, 512], strides = [1, 1]} : vector<9x512xf32> to vector<1x512xf32>
    %61 = vector.broadcast %60 : vector<1x512xf32> to vector<64x512xf32>
    %62 = arith.mulf %59, %61 : vector<64x512xf32>
    %c497_i32_14 = arith.constant 497 : i32
    %63 = tpu.dynamic_rotate %42 by %c497_i32_14 dim 1 : vector<64x512xf32>, i32 -> vector<64x512xf32>
    %64 = vector.extract_strided_slice %2 {offsets = [6, 0], sizes = [1, 512], strides = [1, 1]} : vector<9x512xf32> to vector<1x512xf32>
    %65 = vector.broadcast %64 : vector<1x512xf32> to vector<64x512xf32>
    %66 = arith.mulf %63, %65 : vector<64x512xf32>
    %c496_i32_15 = arith.constant 496 : i32
    %67 = tpu.dynamic_rotate %42 by %c496_i32_15 dim 1 : vector<64x512xf32>, i32 -> vector<64x512xf32>
    %68 = vector.extract_strided_slice %2 {offsets = [7, 0], sizes = [1, 512], strides = [1, 1]} : vector<9x512xf32> to vector<1x512xf32>
    %69 = vector.broadcast %68 : vector<1x512xf32> to vector<64x512xf32>
    %70 = arith.mulf %67, %69 : vector<64x512xf32>
    %c495_i32_16 = arith.constant 495 : i32
    %71 = tpu.dynamic_rotate %42 by %c495_i32_16 dim 1 : vector<64x512xf32>, i32 -> vector<64x512xf32>
    %72 = vector.extract_strided_slice %2 {offsets = [8, 0], sizes = [1, 512], strides = [1, 1]} : vector<9x512xf32> to vector<1x512xf32>
    %73 = vector.broadcast %72 : vector<1x512xf32> to vector<64x512xf32>
    %74 = arith.mulf %71, %73 : vector<64x512xf32>
    %75 = tpu.concatenate %46, %50, %54, %58, %42, %62, %66, %70, %74 in 0 : vector<64x512xf32>, vector<64x512xf32>, vector<64x512xf32>, vector<64x512xf32>, vector<64x512xf32>, vector<64x512xf32>, vector<64x512xf32>, vector<64x512xf32>, vector<64x512xf32> -> vector<576x512xf32>
    %c0_17 = arith.constant 0 : index
    %c0_18 = arith.constant 0 : index
    %76 = vector.load %arg5[%c0_17, %c0_18] : memref<3x576xf32, #tpu.memory_space<vmem>>, vector<3x576xf32>
    %cst_19 = arith.constant dense<0.000000e+00> : vector<3x512xf32>
    %77 = tpu.matmul %76, %75, %cst_19 {dimension_numbers = #tpu.dot_dimension_numbers<[1], [0], [0], [1], [0, 0, 1, 1], [], []>} : vector<3x576xf32>, vector<576x512xf32>, vector<3x512xf32> -> vector<3x512xf32>
    %c0_20 = arith.constant 0 : index
    %c0_21 = arith.constant 0 : index
    %78 = vector.load %arg6[%c0_20, %c0_21] : memref<3x1xf32, #tpu.memory_space<vmem>>, vector<3x1xf32>
    %79 = vector.broadcast %78 : vector<3x1xf32> to vector<3x512xf32>
    %80 = arith.addf %77, %79 : vector<3x512xf32>
    %c0_22 = arith.constant 0 : index
    %c0_23 = arith.constant 0 : index
    %c0_24 = arith.constant 0 : index
    %81 = vector.load %arg7[%c0_22, %c0_23, %c0_24] : memref<1x3x512xf32, #tpu.memory_space<vmem>>, vector<1x3x512xf32>
    %82 = vector.shape_cast %81 : vector<1x3x512xf32> to vector<3x512xf32>
    %83 = vector.shape_cast %80 : vector<3x512xf32> to vector<1x3x512xf32>
    tpu.vector_store %arg7[%c0_22, %c0_23, %c0_24], %83 {strides = array<i32>} : memref<1x3x512xf32, #tpu.memory_space<vmem>>, vector<1x3x512xf32>,
    return
  }
  func.func @transform_0(%arg0: i32) -> (i32, i32, i32) {
    %c0_i32 = arith.constant 0 : i32
    %c0_i32_0 = arith.constant 0 : i32
    %c0_i32_1 = arith.constant 0 : i32
    return %arg0, %c0_i32, %c0_i32_0 : i32, i32, i32
  }
  func.func @transform_1(%arg0: i32) -> (i32, i32) {
    %c0_i32 = arith.constant 0 : i32
    %c0_i32_0 = arith.constant 0 : i32
    %c0_i32_1 = arith.constant 0 : i32
    return %c0_i32, %c0_i32_0 : i32, i32
  }
  func.func @transform_2(%arg0: i32) -> (i32, i32) {
    %c0_i32 = arith.constant 0 : i32
    %c0_i32_0 = arith.constant 0 : i32
    %c0_i32_1 = arith.constant 0 : i32
    return %c0_i32, %c0_i32_0 : i32, i32
  }
  func.func @transform_3(%arg0: i32) -> (i32, i32) {
    %c0_i32 = arith.constant 0 : i32
    %c0_i32_0 = arith.constant 0 : i32
    %c0_i32_1 = arith.constant 0 : i32
    return %c0_i32, %c0_i32_0 : i32, i32
  }
  func.func @transform_4(%arg0: i32) -> (i32, i32) {
    %c0_i32 = arith.constant 0 : i32
    %c0_i32_0 = arith.constant 0 : i32
    %c0_i32_1 = arith.constant 0 : i32
    return %c0_i32, %c0_i32_0 : i32, i32
  }
  func.func @transform_5(%arg0: i32) -> (i32, i32) {
    %c0_i32 = arith.constant 0 : i32
    %c0_i32_0 = arith.constant 0 : i32
    %c0_i32_1 = arith.constant 0 : i32
    return %c0_i32, %c0_i32_0 : i32, i32
  }
  func.func @transform_6(%arg0: i32) -> (i32, i32, i32) {
    %c0_i32 = arith.constant 0 : i32
    %c0_i32_0 = arith.constant 0 : i32
    %c0_i32_1 = arith.constant 0 : i32
    return %arg0, %c0_i32, %c0_i32_0 : i32, i32, i32
  }
}

</mosaic_0001>

<llo_original>
// kernel: generator_forward.1
$region0: #{generator_forward.1}
  #allocation0 [shape = 'u32[]', space=smem, size = 0x4, offset = 0x4, fixed_abs, tag = 'smem constant byte address 0x4 - core index']
  #allocation1 [shape = 'u32[144,128]{1,0:T(1,128)}', space=vmem, size = 0x12000, scoped, tag = 'internal scratch']
  %s0 = inlined_call_operand.vmem [shape: f32[1,8,512], index: 0, kind: input, shape index: {}]
  %s1 = inlined_call_operand.vmem [shape: f32[9,512], index: 1, kind: input, shape index: {}]
  %s2 = inlined_call_operand.vmem [shape: f32[64,72], index: 2, kind: input, shape index: {}]
  %s3 = inlined_call_operand.vmem [shape: f32[64,1], index: 3, kind: input, shape index: {}]
  %s4 = inlined_call_operand.vmem [shape: f32[3,576], index: 4, kind: input, shape index: {}]
  %s5 = inlined_call_operand.vmem [shape: f32[3,1], index: 5, kind: input, shape index: {}]
  %s6 = inlined_call_operand.vmem [shape: f32[1,3,512], index: 6, kind: output, shape index: {}]
  %s7 = sld [smem:[#allocation0]]
  $region34: #{generator_forward.1} parent=0
    _
  %s9 = ssub.s32 1, %s7
  %s10 = scalar_select 0, %s9, %s7
  // Predicated region
  $region2: #{generator_forward.1} parent=0 // pred_check
    _
  $region3: #{generator_forward.1} parent=0 // pred_check_branch
    %12 = sbr.rel (0) target = $region5
  $region4: #{generator_forward.1} parent=0 // pred_region
    _
  $region5: #{generator_forward.1} parent=0 // pred_fallthru
    _
  // Predicated region
  $region6: #{generator_forward.1} parent=0 // pred_check
    _
  $region7: #{generator_forward.1} parent=0 // pred_check_branch
    %14 = sbr.rel (0) target = $region9
  $region8: #{generator_forward.1} parent=0 // pred_region
    _
  $region9: #{generator_forward.1} parent=0 // pred_fallthru
    _
  // Predicated region
  $region10: #{generator_forward.1} parent=0 // pred_check
    _
  $region11: #{generator_forward.1} parent=0 // pred_check_branch
    %16 = sbr.rel (0) target = $region13
  $region12: #{generator_forward.1} parent=0 // pred_region
    _
  $region13: #{generator_forward.1} parent=0 // pred_fallthru
    _
  // Predicated region
  $region14: #{generator_forward.1} parent=0 // pred_check
    _
  $region15: #{generator_forward.1} parent=0 // pred_check_branch
    %18 = sbr.rel (0) target = $region17
  $region16: #{generator_forward.1} parent=0 // pred_region
    _
  $region17: #{generator_forward.1} parent=0 // pred_fallthru
    _
  // Predicated region
  $region18: #{generator_forward.1} parent=0 // pred_check
    _
  $region19: #{generator_forward.1} parent=0 // pred_check_branch
    %20 = sbr.rel (0) target = $region21
  $region20: #{generator_forward.1} parent=0 // pred_region
    _
  $region21: #{generator_forward.1} parent=0 // pred_fallthru
    _
  // Predicated region
  $region22: #{generator_forward.1} parent=0 // pred_check
    _
  $region23: #{generator_forward.1} parent=0 // pred_check_branch
    %22 = sbr.rel (0) target = $region25
  $region24: #{generator_forward.1} parent=0 // pred_region
    _
  $region25: #{generator_forward.1} parent=0 // pred_fallthru
    _
  %v23 = vld [vmem:[%s0] sm:$0xff]
  %v24 = vld [vmem:[%s0 + $0x8] sm:$0xff]
  %v25 = vld [vmem:[%s0 + $0x10] sm:$0xff]
  %v26 = vld [vmem:[%s0 + $0x18] sm:$0xff]
  %v27 = vld [vmem:[%s1] sm:$0xff]
  %v28 = vld [vmem:[%s1 + $0x8] sm:$0xff]
  %v29 = vld [vmem:[%s1 + $0x10] sm:$0xff]
  %v30 = vld [vmem:[%s1 + $0x18] sm:$0xff]
  %v31 = vld [vmem:[%s1 + $0x20] sm:$0x1]
  %v32 = vld [vmem:[%s1 + $0x28] sm:$0x1]
  %v33 = vld [vmem:[%s1 + $0x30] sm:$0x1]
  %v34 = vld [vmem:[%s1 + $0x38] sm:$0x1]
  %35 = vrot.lane.b32.xlu0 %v23, 17
  %v36 = vpop.permute.xlu0 %35
  %37 = vrot.lane.b32.xlu0 %v24, 17
  %v38 = vpop.permute.xlu0 %37
  %39 = vrot.lane.b32.xlu0 %v25, 17
  %v40 = vpop.permute.xlu0 %39
  %41 = vrot.lane.b32.xlu0 %v26, 17
  %v42 = vpop.permute.xlu0 %41
  %v43 = vlaneseq
  %v44 = vand.u32 %v43, 127
  %vm45 = vcmp.lt.s32.totalorder %v44, 17
  %v46 = vsel %vm45, %v40, %v42
  %v47 = vsel %vm45, %v38, %v40
  %v48 = vsel %vm45, %v36, %v38
  %v49 = vsel %vm45, %v42, %v36
  %v50 = vlaneseq
  %v51 = vshrl.u32 %v50, 7
  %v52 = vsub.s32 0, %v51
  %v53 = vrot.slane %v27, %v52
  %v54 = vlaneseq
  %v55 = vshrl.u32 %v54, 7
  %v56 = vsub.s32 0, %v55
  %v57 = vrot.slane %v28, %v56
  %v58 = vlaneseq
  %v59 = vshrl.u32 %v58, 7
  %v60 = vsub.s32 0, %v59
  %v61 = vrot.slane %v29, %v60
  %v62 = vlaneseq
  %v63 = vshrl.u32 %v62, 7
  %v64 = vsub.s32 0, %v63
  %v65 = vrot.slane %v30, %v64
  %v66 = vmul.f32 %v49, %v53
  %v67 = vmul.f32 %v48, %v57
  %v68 = vmul.f32 %v47, %v61
  %v69 = vmul.f32 %v46, %v65
  %70 = vrot.lane.b32.xlu0 %v23, 16
  %v71 = vpop.permute.xlu0 %70
  %72 = vrot.lane.b32.xlu0 %v24, 16
  %v73 = vpop.permute.xlu0 %72
  %74 = vrot.lane.b32.xlu0 %v25, 16
  %v75 = vpop.permute.xlu0 %74
  %76 = vrot.lane.b32.xlu0 %v26, 16
  %v77 = vpop.permute.xlu0 %76
  %vm78 = vcmp.lt.s32.totalorder %v44, 16
  %v79 = vsel %vm78, %v75, %v77
  %v80 = vsel %vm78, %v73, %v75
  %v81 = vsel %vm78, %v71, %v73
  %v82 = vsel %vm78, %v77, %v71
  %v83 = vlaneseq
  %v84 = vshrl.u32 %v83, 7
  %v85 = vsub.s32 1, %v84
  %v86 = vrot.slane %v27, %v85
  %v87 = vlaneseq
  %v88 = vshrl.u32 %v87, 7
  %v89 = vsub.s32 1, %v88
  %v90 = vrot.slane %v28, %v89
  %v91 = vlaneseq
  %v92 = vshrl.u32 %v91, 7
  %v93 = vsub.s32 1, %v92
  %v94 = vrot.slane %v29, %v93
  %v95 = vlaneseq
  %v96 = vshrl.u32 %v95, 7
  %v97 = vsub.s32 1, %v96
  %v98 = vrot.slane %v30, %v97
  %v99 = vmul.f32 %v82, %v86
  %v100 = vmul.f32 %v81, %v90
  %v101 = vmul.f32 %v80, %v94
  %v102 = vmul.f32 %v79, %v98
  %103 = vrot.lane.b32.xlu0 %v23, 15
  %v104 = vpop.permute.xlu0 %103
  %105 = vrot.lane.b32.xlu0 %v24, 15
  %v106 = vpop.permute.xlu0 %105
  %107 = vrot.lane.b32.xlu0 %v25, 15
  %v108 = vpop.permute.xlu0 %107
  %109 = vrot.lane.b32.xlu0 %v26, 15
  %v110 = vpop.permute.xlu0 %109
  %vm111 = vcmp.lt.s32.totalorder %v44, 15
  %v112 = vsel %vm111, %v108, %v110
  %v113 = vsel %vm111, %v106, %v108
  %v114 = vsel %vm111, %v104, %v106
  %v115 = vsel %vm111, %v110, %v104
  %v116 = vlaneseq
  %v117 = vshrl.u32 %v116, 7
  %v118 = vsub.s32 2, %v117
  %v119 = vrot.slane %v27, %v118
  %v120 = vlaneseq
  %v121 = vshrl.u32 %v120, 7
  %v122 = vsub.s32 2, %v121
  %v123 = vrot.slane %v28, %v122
  %v124 = vlaneseq
  %v125 = vshrl.u32 %v124, 7
  %v126 = vsub.s32 2, %v125
  %v127 = vrot.slane %v29, %v126
  %v128 = vlaneseq
  %v129 = vshrl.u32 %v128, 7
  %v130 = vsub.s32 2, %v129
  %v131 = vrot.slane %v30, %v130
  %v132 = vmul.f32 %v115, %v119
  %v133 = vmul.f32 %v114, %v123
  %v134 = vmul.f32 %v113, %v127
  %v135 = vmul.f32 %v112, %v131
  %136 = vrot.lane.b32.xlu0 %v23, 1
  %v137 = vpop.permute.xlu0 %136
  %138 = vrot.lane.b32.xlu0 %v24, 1
  %v139 = vpop.permute.xlu0 %138
  %140 = vrot.lane.b32.xlu0 %v25, 1
  %v141 = vpop.permute.xlu0 %140
  %142 = vrot.lane.b32.xlu0 %v26, 1
  %v143 = vpop.permute.xlu0 %142
  %vm144 = vcmp.lt.s32.totalorder %v44, 1
  %v145 = vsel %vm144, %v141, %v143
  %v146 = vsel %vm144, %v139, %v141
  %v147 = vsel %vm144, %v137, %v139
  %v148 = vsel %vm144, %v143, %v137
  %v149 = vlaneseq
  %v150 = vshrl.u32 %v149, 7
  %v151 = vsub.s32 3, %v150
  %v152 = vrot.slane %v27, %v151
  %v153 = vlaneseq
  %v154 = vshrl.u32 %v153, 7
  %v155 = vsub.s32 3, %v154
  %v156 = vrot.slane %v28, %v155
  %v157 = vlaneseq
  %v158 = vshrl.u32 %v157, 7
  %v159 = vsub.s32 3, %v158
  %v160 = vrot.slane %v29, %v159
  %v161 = vlaneseq
  %v162 = vshrl.u32 %v161, 7
  %v163 = vsub.s32 3, %v162
  %v164 = vrot.slane %v30, %v163
  %v165 = vmul.f32 %v148, %v152
  %v166 = vmul.f32 %v147, %v156
  %v167 = vmul.f32 %v146, %v160
  %v168 = vmul.f32 %v145, %v164
  %169 = vrot.lane.b32.xlu0 %v23, 127
  %v170 = vpop.permute.xlu0 %169
  %171 = vrot.lane.b32.xlu0 %v24, 127
  %v172 = vpop.permute.xlu0 %171
  %173 = vrot.lane.b32.xlu0 %v25, 127
  %v174 = vpop.permute.xlu0 %173
  %175 = vrot.lane.b32.xlu0 %v26, 127
  %v176 = vpop.permute.xlu0 %175
  %vm177 = vcmp.lt.s32.totalorder %v44, 127
  %v178 = vsel %vm177, %v174, %v176
  %v179 = vsel %vm177, %v172, %v174
  %v180 = vsel %vm177, %v170, %v172
  %v181 = vsel %vm177, %v176, %v170
  %v182 = vlaneseq
  %v183 = vshrl.u32 %v182, 7
  %v184 = vsub.s32 5, %v183
  %v185 = vrot.slane %v27, %v184
  %v186 = vlaneseq
  %v187 = vshrl.u32 %v186, 7
  %v188 = vsub.s32 5, %v187
  %v189 = vrot.slane %v28, %v188
  %v190 = vlaneseq
  %v191 = vshrl.u32 %v190, 7
  %v192 = vsub.s32 5, %v191
  %v193 = vrot.slane %v29, %v192
  %v194 = vlaneseq
  %v195 = vshrl.u32 %v194, 7
  %v196 = vsub.s32 5, %v195
  %v197 = vrot.slane %v30, %v196
  %v198 = vmul.f32 %v180, %v185
  %v199 = vmul.f32 %v179, %v189
  %v200 = vmul.f32 %v178, %v193
  %v201 = vmul.f32 %v181, %v197
  %202 = vrot.lane.b32.xlu0 %v23, 113
  %v203 = vpop.permute.xlu0 %202
  %204 = vrot.lane.b32.xlu0 %v24, 113
  %v205 = vpop.permute.xlu0 %204
  %206 = vrot.lane.b32.xlu0 %v25, 113
  %v207 = vpop.permute.xlu0 %206
  %208 = vrot.lane.b32.xlu0 %v26, 113
  %v209 = vpop.permute.xlu0 %208
  %vm210 = vcmp.lt.s32.totalorder %v44, 113
  %v211 = vsel %vm210, %v207, %v209
  %v212 = vsel %vm210, %v205, %v207
  %v213 = vsel %vm210, %v203, %v205
  %v214 = vsel %vm210, %v209, %v203
  %v215 = vlaneseq
  %v216 = vshrl.u32 %v215, 7
  %v217 = vsub.s32 6, %v216
  %v218 = vrot.slane %v27, %v217
  %v219 = vlaneseq
  %v220 = vshrl.u32 %v219, 7
  %v221 = vsub.s32 6, %v220
  %v222 = vrot.slane %v28, %v221
  %v223 = vlaneseq
  %v224 = vshrl.u32 %v223, 7
  %v225 = vsub.s32 6, %v224
  %v226 = vrot.slane %v29, %v225
  %v227 = vlaneseq
  %v228 = vshrl.u32 %v227, 7
  %v229 = vsub.s32 6, %v228
  %v230 = vrot.slane %v30, %v229
  %v231 = vmul.f32 %v213, %v218
  %v232 = vmul.f32 %v212, %v222
  %v233 = vmul.f32 %v211, %v226
  %v234 = vmul.f32 %v214, %v230
  %235 = vrot.lane.b32.xlu0 %v23, 112
  %v236 = vpop.permute.xlu0 %235
  %237 = vrot.lane.b32.xlu0 %v24, 112
  %v238 = vpop.permute.xlu0 %237
  %239 = vrot.lane.b32.xlu0 %v25, 112
  %v240 = vpop.permute.xlu0 %239
  %241 = vrot.lane.b32.xlu0 %v26, 112
  %v242 = vpop.permute.xlu0 %241
  %vm243 = vcmp.lt.s32.totalorder %v44, 112
  %v244 = vsel %vm243, %v240, %v242
  %v245 = vsel %vm243, %v238, %v240
  %v246 = vsel %vm243, %v236, %v238
  %v247 = vsel %vm243, %v242, %v236
  %v248 = vlaneseq
  %v249 = vshrl.u32 %v248, 7
  %v250 = vsub.s32 7, %v249
  %v251 = vrot.slane %v27, %v250
  %v252 = vlaneseq
  %v253 = vshrl.u32 %v252, 7
  %v254 = vsub.s32 7, %v253
  %v255 = vrot.slane %v28, %v254
  %v256 = vlaneseq
  %v257 = vshrl.u32 %v256, 7
  %v258 = vsub.s32 7, %v257
  %v259 = vrot.slane %v29, %v258
  %v260 = vlaneseq
  %v261 = vshrl.u32 %v260, 7
  %v262 = vsub.s32 7, %v261
  %v263 = vrot.slane %v30, %v262
  %v264 = vmul.f32 %v246, %v251
  %v265 = vmul.f32 %v245, %v255
  %v266 = vmul.f32 %v244, %v259
  %v267 = vmul.f32 %v247, %v263
  %268 = vrot.lane.b32.xlu0 %v23, 111
  %v269 = vpop.permute.xlu0 %268
  %270 = vrot.lane.b32.xlu0 %v24, 111
  %v271 = vpop.permute.xlu0 %270
  %272 = vrot.lane.b32.xlu0 %v25, 111
  %v273 = vpop.permute.xlu0 %272
  %274 = vrot.lane.b32.xlu0 %v26, 111
  %v275 = vpop.permute.xlu0 %274
  %vm276 = vcmp.lt.s32.totalorder %v44, 111
  %v277 = vsel %vm276, %v273, %v275
  %v278 = vsel %vm276, %v271, %v273
  %v279 = vsel %vm276, %v269, %v271
  %v280 = vsel %vm276, %v275, %v269
  %v281 = vlaneseq
  %v282 = vshrl.u32 %v281, 7
  %v283 = vsub.s32 0, %v282
  %v284 = vrot.slane %v31, %v283
  %v285 = vlaneseq
  %v286 = vshrl.u32 %v285, 7
  %v287 = vsub.s32 0, %v286
  %v288 = vrot.slane %v32, %v287
  %v289 = vlaneseq
  %v290 = vshrl.u32 %v289, 7
  %v291 = vsub.s32 0, %v290
  %v292 = vrot.slane %v33, %v291
  %v293 = vlaneseq
  %v294 = vshrl.u32 %v293, 7
  %v295 = vsub.s32 0, %v294
  %v296 = vrot.slane %v34, %v295
  %v297 = vmul.f32 %v279, %v284
  %v298 = vmul.f32 %v278, %v288
  %v299 = vmul.f32 %v277, %v292
  %v300 = vmul.f32 %v280, %v296
  %v301 = vld [vmem:[%s2] sm:$0xff]
  %v302 = vld [vmem:[%s2 + $0x8] sm:$0xff]
  %v303 = vld [vmem:[%s2 + $0x10] sm:$0xff]
  %v304 = vld [vmem:[%s2 + $0x18] sm:$0xff]
  %v305 = vld [vmem:[%s2 + $0x20] sm:$0xff]
  %v306 = vld [vmem:[%s2 + $0x28] sm:$0xff]
  %v307 = vld [vmem:[%s2 + $0x30] sm:$0xff]
  %v308 = vld [vmem:[%s2 + $0x38] sm:$0xff]
  %v309 = vld [vmem:[%s3] sm:$0xff]
  %v310 = vld [vmem:[%s3 + $0x8] sm:$0xff]
  %v311 = vld [vmem:[%s3 + $0x10] sm:$0xff]
  %v312 = vld [vmem:[%s3 + $0x18] sm:$0xff]
  %v313 = vld [vmem:[%s3 + $0x20] sm:$0xff]
  %v314 = vld [vmem:[%s3 + $0x28] sm:$0xff]
  %v315 = vld [vmem:[%s3 + $0x30] sm:$0xff]
  %v316 = vld [vmem:[%s3 + $0x38] sm:$0xff]
  %318 = vset.pattern.permute.xlu0 0
  %319 = vperm.xlu0 %318, %v309
  %v320 = vpop.permute.xlu0 %319
  %323 = vset.pattern.permute.xlu0 0
  %324 = vperm.xlu0 %323, %v310
  %v325 = vpop.permute.xlu0 %324
  %328 = vset.pattern.permute.xlu0 0
  %329 = vperm.xlu0 %328, %v311
  %v330 = vpop.permute.xlu0 %329
  %333 = vset.pattern.permute.xlu0 0
  %334 = vperm.xlu0 %333, %v312
  %v335 = vpop.permute.xlu0 %334
  %338 = vset.pattern.permute.xlu0 0
  %339 = vperm.xlu0 %338, %v313
  %v340 = vpop.permute.xlu0 %339
  %343 = vset.pattern.permute.xlu0 0
  %344 = vperm.xlu0 %343, %v314
  %v345 = vpop.permute.xlu0 %344
  %348 = vset.pattern.permute.xlu0 0
  %349 = vperm.xlu0 %348, %v315
  %v350 = vpop.permute.xlu0 %349
  %353 = vset.pattern.permute.xlu0 0
  %354 = vperm.xlu0 %353, %v316
  %v355 = vpop.permute.xlu0 %354
  %vm357 = vcmask 588800
  %v359 = vsel %vm357, %v301, 0
  %v362 = vsel %vm357, %v302, 0
  %v365 = vsel %vm357, %v303, 0
  %v368 = vsel %vm357, %v304, 0
  %v371 = vsel %vm357, %v305, 0
  %v374 = vsel %vm357, %v306, 0
  %v377 = vsel %vm357, %v307, 0
  %v380 = vsel %vm357, %v308, 0
  %382 = vmatprep.subr.mxu0 %v67
  %383 = vmatpush1.msra.mxu0 %v66
  %384 = vmatprep.subr.mxu0 %v100
  %385 = vmatpush1.msra.mxu0 %v99
  %386 = vmatprep.subr.mxu0 %v133
  %387 = vmatpush1.msra.mxu0 %v132
  %388 = vmatprep.subr.mxu0 %v166
  %389 = vmatpush1.msra.mxu0 %v165
  %390 = vmatprep.subr.mxu0 %v24
  %391 = vmatpush1.msra.mxu0 %v23
  %392 = vmatprep.subr.mxu0 %v199
  %393 = vmatpush1.msra.mxu0 %v198
  %394 = vmatprep.subr.mxu0 %v232
  %395 = vmatpush1.msra.mxu0 %v231
  %396 = vmatprep.subr.mxu0 %v265
  %397 = vmatpush1.msra.mxu0 %v264
  %398 = vmatprep.subr.mxu0 %v298
  %399 = vmatpush1.msra.mxu0 %v297
  %400 = vmatprep.subr.mxu0 0.0
  %401 = vmatpush1.msra.mxu0 0.0
  %402 = vmatprep.subr.mxu0 0.0
  %403 = vmatpush1.msra.mxu0 0.0
  %404 = vmatprep.subr.mxu0 0.0
  %405 = vmatpush1.msra.mxu0 0.0
  %406 = vmatprep.subr.mxu0 0.0
  %407 = vmatpush1.msra.mxu0 0.0
  %408 = vmatprep.subr.mxu0 0.0
  %409 = vmatpush1.msra.mxu0 0.0
  %410 = vmatprep.subr.mxu0 0.0
  %411 = vmatpush1.msra.mxu0 0.0
  %412 = vmatprep.subr.mxu0 0.0
  %413 = vmatpush1.msra.mxu0 0.0
  %414 = vmatprep.subr.mxu0 0.0
  %415 = vmatpush1.msra.mxu0 0.0
  %416 = vmatprep.subr.mxu0 0.0
  %417 = vmatpush1.msra.mxu0 0.0
  %418 = vmatprep.subr.mxu0 0.0
  %419 = vmatpush1.msra.mxu0 0.0
  %420 = vmatprep.subr.mxu0 0.0
  %421 = vmatpush1.msra.mxu0 0.0
  %422 = vmatprep.subr.mxu0 0.0
  %423 = vmatpush1.msra.mxu0 0.0
  %424 = vmatprep.subr.mxu0 0.0
  %425 = vmatpush1.msra.mxu0 0.0
  %426 = vmatprep.subr.mxu0 0.0
  %427 = vmatpush1.msra.mxu0 0.0
  %428 = vmatprep.subr.mxu0 0.0
  %429 = vmatpush1.msra.mxu0 0.0
  %430 = vmatprep.subr.mxu0 0.0
  %431 = vmatpush1.msra.mxu0 0.0
  %432 = vmatprep.subr.mxu0 0.0
  %433 = vmatpush1.msra.mxu0 0.0
  %434 = vmatprep.subr.mxu0 0.0
  %435 = vmatpush1.msra.mxu0 0.0
  %436 = vmatprep.subr.mxu0 0.0
  %437 = vmatpush1.msra.mxu0 0.0
  %438 = vmatprep.subr.mxu0 0.0
  %439 = vmatpush1.msra.mxu0 0.0
  %440 = vmatprep.subr.mxu0 0.0
  %441 = vmatpush1.msra.mxu0 0.0
  %442 = vmatprep.subr.mxu0 0.0
  %443 = vmatpush1.msra.mxu0 0.0
  %444 = vmatprep.subr.mxu0 0.0
  %445 = vmatpush1.msra.mxu0 0.0
  %446 = vmatprep.mubr.f32.mxu0 0.0
  %447 = vmatmul.mubr.f32.gmra.mrb[0].mxu0 %v359
  %v448 = vpop.f32.mrb[0].mxu0
  %v449 = vadd.f32 %v320, %v448
  %v450 = vpop.f32.mrb[0].mxu0
  %v451 = vadd.f32 %v320, %v450
  %452 = vmatprep.mubr.f32.mxu0 0.0
  %453 = vmatmul.mubr.f32.gmra.mrb[0].mxu0 %v362
  %v454 = vpop.f32.mrb[0].mxu0
  %v455 = vadd.f32 %v325, %v454
  %v456 = vpop.f32.mrb[0].mxu0
  %v457 = vadd.f32 %v325, %v456
  %458 = vmatprep.mubr.f32.mxu0 0.0
  %459 = vmatmul.mubr.f32.gmra.mrb[0].mxu0 %v365
  %v460 = vpop.f32.mrb[0].mxu0
  %v461 = vadd.f32 %v330, %v460
  %v462 = vpop.f32.mrb[0].mxu0
  %v463 = vadd.f32 %v330, %v462
  %464 = vmatprep.mubr.f32.mxu0 0.0
  %465 = vmatmul.mubr.f32.gmra.mrb[0].mxu0 %v368
  %v466 = vpop.f32.mrb[0].mxu0
  %v467 = vadd.f32 %v335, %v466
  %v468 = vpop.f32.mrb[0].mxu0
  %v469 = vadd.f32 %v335, %v468
  %470 = vmatprep.mubr.f32.mxu0 0.0
  %471 = vmatmul.mubr.f32.gmra.mrb[0].mxu0 %v371
  %v472 = vpop.f32.mrb[0].mxu0
  %v473 = vadd.f32 %v340, %v472
  %v474 = vpop.f32.mrb[0].mxu0
  %v475 = vadd.f32 %v340, %v474
  %476 = vmatprep.mubr.f32.mxu0 0.0
  %477 = vmatmul.mubr.f32.gmra.mrb[0].mxu0 %v374
  %v478 = vpop.f32.mrb[0].mxu0
  %v479 = vadd.f32 %v345, %v478
  %v480 = vpop.f32.mrb[0].mxu0
  %v481 = vadd.f32 %v345, %v480
  %482 = vmatprep.mubr.f32.mxu0 0.0
  %483 = vmatmul.mubr.f32.gmra.mrb[0].mxu0 %v377
  %v484 = vpop.f32.mrb[0].mxu0
  %v485 = vadd.f32 %v350, %v484
  %v486 = vpop.f32.mrb[0].mxu0
  %v487 = vadd.f32 %v350, %v486
  %488 = vmatprep.mubr.f32.mxu0 0.0
  %489 = vmatmul.mubr.f32.gmra.mrb[0].mxu0 %v380
  %v490 = vpop.f32.mrb[0].mxu0
  %v491 = vadd.f32 %v355, %v490
  %v492 = vpop.f32.mrb[0].mxu0
  %v493 = vadd.f32 %v355, %v492
  %494 = vdwg.mxu0
  %495 = vmatprep.subr.mxu0 %v69
  %496 = vmatpush1.msra.mxu0 %v68
  %497 = vmatprep.subr.mxu0 %v102
  %498 = vmatpush1.msra.mxu0 %v101
  %499 = vmatprep.subr.mxu0 %v135
  %500 = vmatpush1.msra.mxu0 %v134
  %501 = vmatprep.subr.mxu0 %v168
  %502 = vmatpush1.msra.mxu0 %v167
  %503 = vmatprep.subr.mxu0 %v26
  %504 = vmatpush1.msra.mxu0 %v25
  %505 = vmatprep.subr.mxu0 %v201
  %506 = vmatpush1.msra.mxu0 %v200
  %507 = vmatprep.subr.mxu0 %v234
  %508 = vmatpush1.msra.mxu0 %v233
  %509 = vmatprep.subr.mxu0 %v267
  %510 = vmatpush1.msra.mxu0 %v266
  %511 = vmatprep.subr.mxu0 %v300
  %512 = vmatpush1.msra.mxu0 %v299
  %513 = vmatprep.subr.mxu0 0.0
  %514 = vmatpush1.msra.mxu0 0.0
  %515 = vmatprep.subr.mxu0 0.0
  %516 = vmatpush1.msra.mxu0 0.0
  %517 = vmatprep.subr.mxu0 0.0
  %518 = vmatpush1.msra.mxu0 0.0
  %519 = vmatprep.subr.mxu0 0.0
  %520 = vmatpush1.msra.mxu0 0.0
  %521 = vmatprep.subr.mxu0 0.0
  %522 = vmatpush1.msra.mxu0 0.0
  %523 = vmatprep.subr.mxu0 0.0
  %524 = vmatpush1.msra.mxu0 0.0
  %525 = vmatprep.subr.mxu0 0.0
  %526 = vmatpush1.msra.mxu0 0.0
  %527 = vmatprep.subr.mxu0 0.0
  %528 = vmatpush1.msra.mxu0 0.0
  %529 = vmatprep.subr.mxu0 0.0
  %530 = vmatpush1.msra.mxu0 0.0
  %531 = vmatprep.subr.mxu0 0.0
  %532 = vmatpush1.msra.mxu0 0.0
  %533 = vmatprep.subr.mxu0 0.0
  %534 = vmatpush1.msra.mxu0 0.0
  %535 = vmatprep.subr.mxu0 0.0
  %536 = vmatpush1.msra.mxu0 0.0
  %537 = vmatprep.subr.mxu0 0.0
  %538 = vmatpush1.msra.mxu0 0.0
  %539 = vmatprep.subr.mxu0 0.0
  %540 = vmatpush1.msra.mxu0 0.0
  %541 = vmatprep.subr.mxu0 0.0
  %542 = vmatpush1.msra.mxu0 0.0
  %543 = vmatprep.subr.mxu0 0.0
  %544 = vmatpush1.msra.mxu0 0.0
  %545 = vmatprep.subr.mxu0 0.0
  %546 = vmatpush1.msra.mxu0 0.0
  %547 = vmatprep.subr.mxu0 0.0
  %548 = vmatpush1.msra.mxu0 0.0
  %549 = vmatprep.subr.mxu0 0.0
  %550 = vmatpush1.msra.mxu0 0.0
  %551 = vmatprep.subr.mxu0 0.0
  %552 = vmatpush1.msra.mxu0 0.0
  %553 = vmatprep.subr.mxu0 0.0
  %554 = vmatpush1.msra.mxu0 0.0
  %555 = vmatprep.subr.mxu0 0.0
  %556 = vmatpush1.msra.mxu0 0.0
  %557 = vmatprep.subr.mxu0 0.0
  %558 = vmatpush1.msra.mxu0 0.0
  %559 = vmatprep.mubr.f32.mxu0 0.0
  %560 = vmatmul.mubr.f32.gmra.mrb[0].mxu0 %v359
  %v561 = vpop.f32.mrb[0].mxu0
  %v562 = vadd.f32 %v320, %v561
  %v563 = vpop.f32.mrb[0].mxu0
  %v564 = vadd.f32 %v320, %v563
  %565 = vmatprep.mubr.f32.mxu0 0.0
  %566 = vmatmul.mubr.f32.gmra.mrb[0].mxu0 %v362
  %v567 = vpop.f32.mrb[0].mxu0
  %v568 = vadd.f32 %v325, %v567
  %v569 = vpop.f32.mrb[0].mxu0
  %v570 = vadd.f32 %v325, %v569
  %571 = vmatprep.mubr.f32.mxu0 0.0
  %572 = vmatmul.mubr.f32.gmra.mrb[0].mxu0 %v365
  %v573 = vpop.f32.mrb[0].mxu0
  %v574 = vadd.f32 %v330, %v573
  %v575 = vpop.f32.mrb[0].mxu0
  %v576 = vadd.f32 %v330, %v575
  %577 = vmatprep.mubr.f32.mxu0 0.0
  %578 = vmatmul.mubr.f32.gmra.mrb[0].mxu0 %v368
  %v579 = vpop.f32.mrb[0].mxu0
  %v580 = vadd.f32 %v335, %v579
  %v581 = vpop.f32.mrb[0].mxu0
  %v582 = vadd.f32 %v335, %v581
  %583 = vmatprep.mubr.f32.mxu0 0.0
  %584 = vmatmul.mubr.f32.gmra.mrb[0].mxu0 %v371
  %v585 = vpop.f32.mrb[0].mxu0
  %v586 = vadd.f32 %v340, %v585
  %v587 = vpop.f32.mrb[0].mxu0
  %v588 = vadd.f32 %v340, %v587
  %589 = vmatprep.mubr.f32.mxu0 0.0
  %590 = vmatmul.mubr.f32.gmra.mrb[0].mxu0 %v374
  %v591 = vpop.f32.mrb[0].mxu0
  %v592 = vadd.f32 %v345, %v591
  %v593 = vpop.f32.mrb[0].mxu0
  %v594 = vadd.f32 %v345, %v593
  %595 = vmatprep.mubr.f32.mxu0 0.0
  %596 = vmatmul.mubr.f32.gmra.mrb[0].mxu0 %v377
  %v597 = vpop.f32.mrb[0].mxu0
  %v598 = vadd.f32 %v350, %v597
  %v599 = vpop.f32.mrb[0].mxu0
  %v600 = vadd.f32 %v350, %v599
  %601 = vmatprep.mubr.f32.mxu0 0.0
  %602 = vmatmul.mubr.f32.gmra.mrb[0].mxu0 %v380
  %v603 = vpop.f32.mrb[0].mxu0
  %v604 = vadd.f32 %v355, %v603
  %v605 = vpop.f32.mrb[0].mxu0
  %v606 = vadd.f32 %v355, %v605
  %607 = vdwg.mxu0
  %v608 = vmax.f32 %v449, 0.0
  %v609 = vmax.f32 %v451, 0.0
  %v610 = vmax.f32 %v562, 0.0
  %v611 = vmax.f32 %v564, 0.0
  %v612 = vmax.f32 %v455, 0.0
  %v613 = vmax.f32 %v457, 0.0
  %v614 = vmax.f32 %v568, 0.0
  %v615 = vmax.f32 %v570, 0.0
  %v616 = vmax.f32 %v461, 0.0
  %v617 = vmax.f32 %v463, 0.0
  %v618 = vmax.f32 %v574, 0.0
  %v619 = vmax.f32 %v576, 0.0
  %v620 = vmax.f32 %v467, 0.0
  %v621 = vmax.f32 %v469, 0.0
  %v622 = vmax.f32 %v580, 0.0
  %v623 = vmax.f32 %v582, 0.0
  %v624 = vmax.f32 %v473, 0.0
  %v625 = vmax.f32 %v475, 0.0
  %v626 = vmax.f32 %v586, 0.0
  %v627 = vmax.f32 %v588, 0.0
  %v628 = vmax.f32 %v479, 0.0
  %v629 = vmax.f32 %v481, 0.0
  %v630 = vmax.f32 %v592, 0.0
  %v631 = vmax.f32 %v594, 0.0
  %v632 = vmax.f32 %v485, 0.0
  %v633 = vmax.f32 %v487, 0.0
  %v634 = vmax.f32 %v598, 0.0
  %v635 = vmax.f32 %v600, 0.0
  %v636 = vmax.f32 %v491, 0.0
  %v637 = vmax.f32 %v493, 0.0
  %v638 = vmax.f32 %v604, 0.0
  %v639 = vmax.f32 %v606, 0.0
  %640 = vrot.lane.b32.xlu0 %v608, 17
  %v641 = vpop.permute.xlu0 %640
  %642 = vrot.lane.b32.xlu0 %v612, 17
  %v643 = vpop.permute.xlu0 %642
  %644 = vrot.lane.b32.xlu0 %v616, 17
  %v645 = vpop.permute.xlu0 %644
  %646 = vrot.lane.b32.xlu0 %v620, 17
  %v647 = vpop.permute.xlu0 %646
  %648 = vrot.lane.b32.xlu0 %v624, 17
  %v649 = vpop.permute.xlu0 %648
  %650 = vrot.lane.b32.xlu0 %v628, 17
  %v651 = vpop.permute.xlu0 %650
  %652 = vrot.lane.b32.xlu0 %v632, 17
  %v653 = vpop.permute.xlu0 %652
  %654 = vrot.lane.b32.xlu0 %v636, 17
  %v655 = vpop.permute.xlu0 %654
  %656 = vrot.lane.b32.xlu0 %v609, 17
  %v657 = vpop.permute.xlu0 %656
  %658 = vrot.lane.b32.xlu0 %v613, 17
  %v659 = vpop.permute.xlu0 %658
  %660 = vrot.lane.b32.xlu0 %v617, 17
  %v661 = vpop.permute.xlu0 %660
  %662 = vrot.lane.b32.xlu0 %v621, 17
  %v663 = vpop.permute.xlu0 %662
  %664 = vrot.lane.b32.xlu0 %v625, 17
  %v665 = vpop.permute.xlu0 %664
  %666 = vrot.lane.b32.xlu0 %v629, 17
  %v667 = vpop.permute.xlu0 %666
  %668 = vrot.lane.b32.xlu0 %v633, 17
  %v669 = vpop.permute.xlu0 %668
  %670 = vrot.lane.b32.xlu0 %v637, 17
  %v671 = vpop.permute.xlu0 %670
  %672 = vrot.lane.b32.xlu0 %v610, 17
  %v673 = vpop.permute.xlu0 %672
  %674 = vrot.lane.b32.xlu0 %v614, 17
  %v675 = vpop.permute.xlu0 %674
  %676 = vrot.lane.b32.xlu0 %v618, 17
  %v677 = vpop.permute.xlu0 %676
  %678 = vrot.lane.b32.xlu0 %v622, 17
  %v679 = vpop.permute.xlu0 %678
  %680 = vrot.lane.b32.xlu0 %v626, 17
  %v681 = vpop.permute.xlu0 %680
  %682 = vrot.lane.b32.xlu0 %v630, 17
  %v683 = vpop.permute.xlu0 %682
  %684 = vrot.lane.b32.xlu0 %v634, 17
  %v685 = vpop.permute.xlu0 %684
  %686 = vrot.lane.b32.xlu0 %v638, 17
  %v687 = vpop.permute.xlu0 %686
  %688 = vrot.lane.b32.xlu0 %v611, 17
  %v689 = vpop.permute.xlu0 %688
  %690 = vrot.lane.b32.xlu0 %v615, 17
  %v691 = vpop.permute.xlu0 %690
  %692 = vrot.lane.b32.xlu0 %v619, 17
  %v693 = vpop.permute.xlu0 %692
  %694 = vrot.lane.b32.xlu0 %v623, 17
  %v695 = vpop.permute.xlu0 %694
  %696 = vrot.lane.b32.xlu0 %v627, 17
  %v697 = vpop.permute.xlu0 %696
  %698 = vrot.lane.b32.xlu0 %v631, 17
  %v699 = vpop.permute.xlu0 %698
  %700 = vrot.lane.b32.xlu0 %v635, 17
  %v701 = vpop.permute.xlu0 %700
  %702 = vrot.lane.b32.xlu0 %v639, 17
  %v703 = vpop.permute.xlu0 %702
  %v704 = vsel %vm45, %v673, %v689
  %v705 = vsel %vm45, %v675, %v691
  %v706 = vsel %vm45, %v677, %v693
  %v707 = vsel %vm45, %v679, %v695
  %v708 = vsel %vm45, %v681, %v697
  %v709 = vsel %vm45, %v683, %v699
  %v710 = vsel %vm45, %v685, %v701
  %v711 = vsel %vm45, %v687, %v703
  %v712 = vsel %vm45, %v657, %v673
  %v713 = vsel %vm45, %v659, %v675
  %v714 = vsel %vm45, %v661, %v677
  %v715 = vsel %vm45, %v663, %v679
  %v716 = vsel %vm45, %v665, %v681
  %v717 = vsel %vm45, %v667, %v683
  %v718 = vsel %vm45, %v669, %v685
  %v719 = vsel %vm45, %v671, %v687
  %v720 = vsel %vm45, %v641, %v657
  %v721 = vsel %vm45, %v643, %v659
  %v722 = vsel %vm45, %v645, %v661
  %v723 = vsel %vm45, %v647, %v663
  %v724 = vsel %vm45, %v649, %v665
  %v725 = vsel %vm45, %v651, %v667
  %v726 = vsel %vm45, %v653, %v669
  %v727 = vsel %vm45, %v655, %v671
  %v728 = vsel %vm45, %v689, %v641
  %v729 = vsel %vm45, %v691, %v643
  %v730 = vsel %vm45, %v693, %v645
  %v731 = vsel %vm45, %v695, %v647
  %v732 = vsel %vm45, %v697, %v649
  %v733 = vsel %vm45, %v699, %v651
  %v734 = vsel %vm45, %v701, %v653
  %v735 = vsel %vm45, %v703, %v655
  %v736 = vmul.f32 %v728, %v53
  %v737 = vmul.f32 %v720, %v57
  %v738 = vmul.f32 %v712, %v61
  %v739 = vmul.f32 %v704, %v65
  %v740 = vmul.f32 %v729, %v53
  %v741 = vmul.f32 %v721, %v57
  %v742 = vmul.f32 %v713, %v61
  %v743 = vmul.f32 %v705, %v65
  %v744 = vmul.f32 %v730, %v53
  %v745 = vmul.f32 %v722, %v57
  %v746 = vmul.f32 %v714, %v61
  %v747 = vmul.f32 %v706, %v65
  %v748 = vmul.f32 %v731, %v53
  %v749 = vmul.f32 %v723, %v57
  %v750 = vmul.f32 %v715, %v61
  %v751 = vmul.f32 %v707, %v65
  %v752 = vmul.f32 %v732, %v53
  %v753 = vmul.f32 %v724, %v57
  %v754 = vmul.f32 %v716, %v61
  %v755 = vmul.f32 %v708, %v65
  %v756 = vmul.f32 %v733, %v53
  %v757 = vmul.f32 %v725, %v57
  %v758 = vmul.f32 %v717, %v61
  %v759 = vmul.f32 %v709, %v65
  %v760 = vmul.f32 %v734, %v53
  %v761 = vmul.f32 %v726, %v57
  %v762 = vmul.f32 %v718, %v61
  %v763 = vmul.f32 %v710, %v65
  %v764 = vmul.f32 %v735, %v53
  %v765 = vmul.f32 %v727, %v57
  %v766 = vmul.f32 %v719, %v61
  %v767 = vmul.f32 %v711, %v65
  %768 = vrot.lane.b32.xlu0 %v608, 16
  %v769 = vpop.permute.xlu0 %768
  %770 = vrot.lane.b32.xlu0 %v612, 16
  %v771 = vpop.permute.xlu0 %770
  %772 = vrot.lane.b32.xlu0 %v616, 16
  %v773 = vpop.permute.xlu0 %772
  %774 = vrot.lane.b32.xlu0 %v620, 16
  %v775 = vpop.permute.xlu0 %774
  %776 = vrot.lane.b32.xlu0 %v624, 16
  %v777 = vpop.permute.xlu0 %776
  %778 = vrot.lane.b32.xlu0 %v628, 16
  %v779 = vpop.permute.xlu0 %778
  %780 = vrot.lane.b32.xlu0 %v632, 16
  %v781 = vpop.permute.xlu0 %780
  %782 = vrot.lane.b32.xlu0 %v636, 16
  %v783 = vpop.permute.xlu0 %782
  %784 = vrot.lane.b32.xlu0 %v609, 16
  %v785 = vpop.permute.xlu0 %784
  %786 = vrot.lane.b32.xlu0 %v613, 16
  %v787 = vpop.permute.xlu0 %786
  %788 = vrot.lane.b32.xlu0 %v617, 16
  %v789 = vpop.permute.xlu0 %788
  %790 = vrot.lane.b32.xlu0 %v621, 16
  %v791 = vpop.permute.xlu0 %790
  %792 = vrot.lane.b32.xlu0 %v625, 16
  %v793 = vpop.permute.xlu0 %792
  %794 = vrot.lane.b32.xlu0 %v629, 16
  %v795 = vpop.permute.xlu0 %794
  %796 = vrot.lane.b32.xlu0 %v633, 16
  %v797 = vpop.permute.xlu0 %796
  %798 = vrot.lane.b32.xlu0 %v637, 16
  %v799 = vpop.permute.xlu0 %798
  %800 = vrot.lane.b32.xlu0 %v610, 16
  %v801 = vpop.permute.xlu0 %800
  %802 = vrot.lane.b32.xlu0 %v614, 16
  %v803 = vpop.permute.xlu0 %802
  %804 = vrot.lane.b32.xlu0 %v618, 16
  %v805 = vpop.permute.xlu0 %804
  %806 = vrot.lane.b32.xlu0 %v622, 16
  %v807 = vpop.permute.xlu0 %806
  %808 = vrot.lane.b32.xlu0 %v626, 16
  %v809 = vpop.permute.xlu0 %808
  %810 = vrot.lane.b32.xlu0 %v630, 16
  %v811 = vpop.permute.xlu0 %810
  %812 = vrot.lane.b32.xlu0 %v634, 16
  %v813 = vpop.permute.xlu0 %812
  %814 = vrot.lane.b32.xlu0 %v638, 16
  %v815 = vpop.permute.xlu0 %814
  %816 = vrot.lane.b32.xlu0 %v611, 16
  %v817 = vpop.permute.xlu0 %816
  %818 = vrot.lane.b32.xlu0 %v615, 16
  %v819 = vpop.permute.xlu0 %818
  %820 = vrot.lane.b32.xlu0 %v619, 16
  %v821 = vpop.permute.xlu0 %820
  %822 = vrot.lane.b32.xlu0 %v623, 16
  %v823 = vpop.permute.xlu0 %822
  %824 = vrot.lane.b32.xlu0 %v627, 16
  %v825 = vpop.permute.xlu0 %824
  %826 = vrot.lane.b32.xlu0 %v631, 16
  %v827 = vpop.permute.xlu0 %826
  %828 = vrot.lane.b32.xlu0 %v635, 16
  %v829 = vpop.permute.xlu0 %828
  %830 = vrot.lane.b32.xlu0 %v639, 16
  %v831 = vpop.permute.xlu0 %830
  %v832 = vsel %vm78, %v801, %v817
  %v833 = vsel %vm78, %v803, %v819
  %v834 = vsel %vm78, %v805, %v821
  %v835 = vsel %vm78, %v807, %v823
  %v836 = vsel %vm78, %v809, %v825
  %v837 = vsel %vm78, %v811, %v827
  %v838 = vsel %vm78, %v813, %v829
  %v839 = vsel %vm78, %v815, %v831
  %v840 = vsel %vm78, %v785, %v801
  %v841 = vsel %vm78, %v787, %v803
  %v842 = vsel %vm78, %v789, %v805
  %v843 = vsel %vm78, %v791, %v807
  %v844 = vsel %vm78, %v793, %v809
  %v845 = vsel %vm78, %v795, %v811
  %v846 = vsel %vm78, %v797, %v813
  %v847 = vsel %vm78, %v799, %v815
  %v848 = vsel %vm78, %v769, %v785
  %v849 = vsel %vm78, %v771, %v787
  %v850 = vsel %vm78, %v773, %v789
  %v851 = vsel %vm78, %v775, %v791
  %v852 = vsel %vm78, %v777, %v793
  %v853 = vsel %vm78, %v779, %v795
  %v854 = vsel %vm78, %v781, %v797
  %v855 = vsel %vm78, %v783, %v799
  %v856 = vsel %vm78, %v817, %v769
  %v857 = vsel %vm78, %v819, %v771
  %v858 = vsel %vm78, %v821, %v773
  %v859 = vsel %vm78, %v823, %v775
  %v860 = vsel %vm78, %v825, %v777
  %v861 = vsel %vm78, %v827, %v779
  %v862 = vsel %vm78, %v829, %v781
  %v863 = vsel %vm78, %v831, %v783
  %v864 = vmul.f32 %v856, %v86
  %v865 = vmul.f32 %v848, %v90
  %v866 = vmul.f32 %v840, %v94
  %v867 = vmul.f32 %v832, %v98
  %v868 = vmul.f32 %v857, %v86
  %v869 = vmul.f32 %v849, %v90
  %v870 = vmul.f32 %v841, %v94
  %v871 = vmul.f32 %v833, %v98
  %v872 = vmul.f32 %v858, %v86
  %v873 = vmul.f32 %v850, %v90
  %v874 = vmul.f32 %v842, %v94
  %v875 = vmul.f32 %v834, %v98
  %v876 = vmul.f32 %v859, %v86
  %v877 = vmul.f32 %v851, %v90
  %v878 = vmul.f32 %v843, %v94
  %v879 = vmul.f32 %v835, %v98
  %v880 = vmul.f32 %v860, %v86
  %v881 = vmul.f32 %v852, %v90
  %v882 = vmul.f32 %v844, %v94
  %v883 = vmul.f32 %v836, %v98
  %v884 = vmul.f32 %v861, %v86
  %v885 = vmul.f32 %v853, %v90
  %v886 = vmul.f32 %v845, %v94
  %v887 = vmul.f32 %v837, %v98
  %v888 = vmul.f32 %v862, %v86
  %v889 = vmul.f32 %v854, %v90
  %v890 = vmul.f32 %v846, %v94
  %v891 = vmul.f32 %v838, %v98
  %v892 = vmul.f32 %v863, %v86
  %v893 = vmul.f32 %v855, %v90
  %v894 = vmul.f32 %v847, %v94
  %v895 = vmul.f32 %v839, %v98
  %896 = vrot.lane.b32.xlu0 %v608, 15
  %v897 = vpop.permute.xlu0 %896
  %898 = vrot.lane.b32.xlu0 %v612, 15
  %v899 = vpop.permute.xlu0 %898
  %900 = vrot.lane.b32.xlu0 %v616, 15
  %v901 = vpop.permute.xlu0 %900
  %902 = vrot.lane.b32.xlu0 %v620, 15
  %v903 = vpop.permute.xlu0 %902
  %904 = vrot.lane.b32.xlu0 %v624, 15
  %v905 = vpop.permute.xlu0 %904
  %906 = vrot.lane.b32.xlu0 %v628, 15
  %v907 = vpop.permute.xlu0 %906
  %908 = vrot.lane.b32.xlu0 %v632, 15
  %v909 = vpop.permute.xlu0 %908
  %910 = vrot.lane.b32.xlu0 %v636, 15
  %v911 = vpop.permute.xlu0 %910
  %912 = vrot.lane.b32.xlu0 %v609, 15
  %v913 = vpop.permute.xlu0 %912
  %914 = vrot.lane.b32.xlu0 %v613, 15
  %v915 = vpop.permute.xlu0 %914
  %916 = vrot.lane.b32.xlu0 %v617, 15
  %v917 = vpop.permute.xlu0 %916
  %918 = vrot.lane.b32.xlu0 %v621, 15
  %v919 = vpop.permute.xlu0 %918
  %920 = vrot.lane.b32.xlu0 %v625, 15
  %v921 = vpop.permute.xlu0 %920
  %922 = vrot.lane.b32.xlu0 %v629, 15
  %v923 = vpop.permute.xlu0 %922
  %924 = vrot.lane.b32.xlu0 %v633, 15
  %v925 = vpop.permute.xlu0 %924
  %926 = vrot.lane.b32.xlu0 %v637, 15
  %v927 = vpop.permute.xlu0 %926
  %928 = vrot.lane.b32.xlu0 %v610, 15
  %v929 = vpop.permute.xlu0 %928
  %930 = vrot.lane.b32.xlu0 %v614, 15
  %v931 = vpop.permute.xlu0 %930
  %932 = vrot.lane.b32.xlu0 %v618, 15
  %v933 = vpop.permute.xlu0 %932
  %934 = vrot.lane.b32.xlu0 %v622, 15
  %v935 = vpop.permute.xlu0 %934
  %936 = vrot.lane.b32.xlu0 %v626, 15
  %v937 = vpop.permute.xlu0 %936
  %938 = vrot.lane.b32.xlu0 %v630, 15
  %v939 = vpop.permute.xlu0 %938
  %940 = vrot.lane.b32.xlu0 %v634, 15
  %v941 = vpop.permute.xlu0 %940
  %942 = vrot.lane.b32.xlu0 %v638, 15
  %v943 = vpop.permute.xlu0 %942
  %944 = vrot.lane.b32.xlu0 %v611, 15
  %v945 = vpop.permute.xlu0 %944
  %946 = vrot.lane.b32.xlu0 %v615, 15
  %v947 = vpop.permute.xlu0 %946
  %948 = vrot.lane.b32.xlu0 %v619, 15
  %v949 = vpop.permute.xlu0 %948
  %950 = vrot.lane.b32.xlu0 %v623, 15
  %v951 = vpop.permute.xlu0 %950
  %952 = vrot.lane.b32.xlu0 %v627, 15
  %v953 = vpop.permute.xlu0 %952
  %954 = vrot.lane.b32.xlu0 %v631, 15
  %v955 = vpop.permute.xlu0 %954
  %956 = vrot.lane.b32.xlu0 %v635, 15
  %v957 = vpop.permute.xlu0 %956
  %958 = vrot.lane.b32.xlu0 %v639, 15
  %v959 = vpop.permute.xlu0 %958
  %v960 = vsel %vm111, %v929, %v945
  %v961 = vsel %vm111, %v931, %v947
  %v962 = vsel %vm111, %v933, %v949
  %v963 = vsel %vm111, %v935, %v951
  %v964 = vsel %vm111, %v937, %v953
  %v965 = vsel %vm111, %v939, %v955
  %v966 = vsel %vm111, %v941, %v957
  %v967 = vsel %vm111, %v943, %v959
  %v968 = vsel %vm111, %v913, %v929
  %v969 = vsel %vm111, %v915, %v931
  %v970 = vsel %vm111, %v917, %v933
  %v971 = vsel %vm111, %v919, %v935
  %v972 = vsel %vm111, %v921, %v937
  %v973 = vsel %vm111, %v923, %v939
  %v974 = vsel %vm111, %v925, %v941
  %v975 = vsel %vm111, %v927, %v943
  %v976 = vsel %vm111, %v897, %v913
  %v977 = vsel %vm111, %v899, %v915
  %v978 = vsel %vm111, %v901, %v917
  %v979 = vsel %vm111, %v903, %v919
  %v980 = vsel %vm111, %v905, %v921
  %v981 = vsel %vm111, %v907, %v923
  %v982 = vsel %vm111, %v909, %v925
  %v983 = vsel %vm111, %v911, %v927
  %v984 = vsel %vm111, %v945, %v897
  %v985 = vsel %vm111, %v947, %v899
  %v986 = vsel %vm111, %v949, %v901
  %v987 = vsel %vm111, %v951, %v903
  %v988 = vsel %vm111, %v953, %v905
  %v989 = vsel %vm111, %v955, %v907
  %v990 = vsel %vm111, %v957, %v909
  %v991 = vsel %vm111, %v959, %v911
  %v992 = vmul.f32 %v984, %v119
  %v993 = vmul.f32 %v976, %v123
  %v994 = vmul.f32 %v968, %v127
  %v995 = vmul.f32 %v960, %v131
  %v996 = vmul.f32 %v985, %v119
  %v997 = vmul.f32 %v977, %v123
  %v998 = vmul.f32 %v969, %v127
  %v999 = vmul.f32 %v961, %v131
  %v1000 = vmul.f32 %v986, %v119
  %v1001 = vmul.f32 %v978, %v123
  %v1002 = vmul.f32 %v970, %v127
  %v1003 = vmul.f32 %v962, %v131
  %v1004 = vmul.f32 %v987, %v119
  %v1005 = vmul.f32 %v979, %v123
  %v1006 = vmul.f32 %v971, %v127
  %v1007 = vmul.f32 %v963, %v131
  %v1008 = vmul.f32 %v988, %v119
  %v1009 = vmul.f32 %v980, %v123
  %v1010 = vmul.f32 %v972, %v127
  %v1011 = vmul.f32 %v964, %v131
  %v1012 = vmul.f32 %v989, %v119
  %v1013 = vmul.f32 %v981, %v123
  %v1014 = vmul.f32 %v973, %v127
  %v1015 = vmul.f32 %v965, %v131
  %v1016 = vmul.f32 %v990, %v119
  %v1017 = vmul.f32 %v982, %v123
  %v1018 = vmul.f32 %v974, %v127
  %v1019 = vmul.f32 %v966, %v131
  %v1020 = vmul.f32 %v991, %v119
  %v1021 = vmul.f32 %v983, %v123
  %v1022 = vmul.f32 %v975, %v127
  %v1023 = vmul.f32 %v967, %v131
  %1024 = vrot.lane.b32.xlu0 %v608, 1
  %v1025 = vpop.permute.xlu0 %1024
  %1026 = vrot.lane.b32.xlu0 %v612, 1
  %v1027 = vpop.permute.xlu0 %1026
  %1028 = vrot.lane.b32.xlu0 %v616, 1
  %v1029 = vpop.permute.xlu0 %1028
  %1030 = vrot.lane.b32.xlu0 %v620, 1
  %v1031 = vpop.permute.xlu0 %1030
  %1032 = vrot.lane.b32.xlu0 %v624, 1
  %v1033 = vpop.permute.xlu0 %1032
  %1034 = vrot.lane.b32.xlu0 %v628, 1
  %v1035 = vpop.permute.xlu0 %1034
  %1036 = vrot.lane.b32.xlu0 %v632, 1
  %v1037 = vpop.permute.xlu0 %1036
  %1038 = vrot.lane.b32.xlu0 %v636, 1
  %v1039 = vpop.permute.xlu0 %1038
  %1040 = vrot.lane.b32.xlu0 %v609, 1
  %v1041 = vpop.permute.xlu0 %1040
  %1042 = vrot.lane.b32.xlu0 %v613, 1
  %v1043 = vpop.permute.xlu0 %1042
  %1044 = vrot.lane.b32.xlu0 %v617, 1
  %v1045 = vpop.permute.xlu0 %1044
  %1046 = vrot.lane.b32.xlu0 %v621, 1
  %v1047 = vpop.permute.xlu0 %1046
  %1048 = vrot.lane.b32.xlu0 %v625, 1
  %v1049 = vpop.permute.xlu0 %1048
  %1050 = vrot.lane.b32.xlu0 %v629, 1
  %v1051 = vpop.permute.xlu0 %1050
  %1052 = vrot.lane.b32.xlu0 %v633, 1
  %v1053 = vpop.permute.xlu0 %1052
  %1054 = vrot.lane.b32.xlu0 %v637, 1
  %v1055 = vpop.permute.xlu0 %1054
  %1056 = vrot.lane.b32.xlu0 %v610, 1
  %v1057 = vpop.permute.xlu0 %1056
  %1058 = vrot.lane.b32.xlu0 %v614, 1
  %v1059 = vpop.permute.xlu0 %1058
  %1060 = vrot.lane.b32.xlu0 %v618, 1
  %v1061 = vpop.permute.xlu0 %1060
  %1062 = vrot.lane.b32.xlu0 %v622, 1
  %v1063 = vpop.permute.xlu0 %1062
  %1064 = vrot.lane.b32.xlu0 %v626, 1
  %v1065 = vpop.permute.xlu0 %1064
  %1066 = vrot.lane.b32.xlu0 %v630, 1
  %v1067 = vpop.permute.xlu0 %1066
  %1068 = vrot.lane.b32.xlu0 %v634, 1
  %v1069 = vpop.permute.xlu0 %1068
  %1070 = vrot.lane.b32.xlu0 %v638, 1
  %v1071 = vpop.permute.xlu0 %1070
  %1072 = vrot.lane.b32.xlu0 %v611, 1
  %v1073 = vpop.permute.xlu0 %1072
  %1074 = vrot.lane.b32.xlu0 %v615, 1
  %v1075 = vpop.permute.xlu0 %1074
  %1076 = vrot.lane.b32.xlu0 %v619, 1
  %v1077 = vpop.permute.xlu0 %1076
  %1078 = vrot.lane.b32.xlu0 %v623, 1
  %v1079 = vpop.permute.xlu0 %1078
  %1080 = vrot.lane.b32.xlu0 %v627, 1
  %v1081 = vpop.permute.xlu0 %1080
  %1082 = vrot.lane.b32.xlu0 %v631, 1
  %v1083 = vpop.permute.xlu0 %1082
  %1084 = vrot.lane.b32.xlu0 %v635, 1
  %v1085 = vpop.permute.xlu0 %1084
  %1086 = vrot.lane.b32.xlu0 %v639, 1
  %v1087 = vpop.permute.xlu0 %1086
  %v1088 = vsel %vm144, %v1057, %v1073
  %v1089 = vsel %vm144, %v1059, %v1075
  %v1090 = vsel %vm144, %v1061, %v1077
  %v1091 = vsel %vm144, %v1063, %v1079
  %v1092 = vsel %vm144, %v1065, %v1081
  %v1093 = vsel %vm144, %v1067, %v1083
  %v1094 = vsel %vm144, %v1069, %v1085
  %v1095 = vsel %vm144, %v1071, %v1087
  %v1096 = vsel %vm144, %v1041, %v1057
  %v1097 = vsel %vm144, %v1043, %v1059
  %v1098 = vsel %vm144, %v1045, %v1061
  %v1099 = vsel %vm144, %v1047, %v1063
  %v1100 = vsel %vm144, %v1049, %v1065
  %v1101 = vsel %vm144, %v1051, %v1067
  %v1102 = vsel %vm144, %v1053, %v1069
  %v1103 = vsel %vm144, %v1055, %v1071
  %v1104 = vsel %vm144, %v1025, %v1041
  %v1105 = vsel %vm144, %v1027, %v1043
  %v1106 = vsel %vm144, %v1029, %v1045
  %v1107 = vsel %vm144, %v1031, %v1047
  %v1108 = vsel %vm144, %v1033, %v1049
  %v1109 = vsel %vm144, %v1035, %v1051
  %v1110 = vsel %vm144, %v1037, %v1053
  %v1111 = vsel %vm144, %v1039, %v1055
  %v1112 = vsel %vm144, %v1073, %v1025
  %v1113 = vsel %vm144, %v1075, %v1027
  %v1114 = vsel %vm144, %v1077, %v1029
  %v1115 = vsel %vm144, %v1079, %v1031
  %v1116 = vsel %vm144, %v1081, %v1033
  %v1117 = vsel %vm144, %v1083, %v1035
  %v1118 = vsel %vm144, %v1085, %v1037
  %v1119 = vsel %vm144, %v1087, %v1039
  %v1120 = vmul.f32 %v1112, %v152
  %v1121 = vmul.f32 %v1104, %v156
  %v1122 = vmul.f32 %v1096, %v160
  %v1123 = vmul.f32 %v1088, %v164
  %v1124 = vmul.f32 %v1113, %v152
  %v1125 = vmul.f32 %v1105, %v156
  %v1126 = vmul.f32 %v1097, %v160
  %v1127 = vmul.f32 %v1089, %v164
  %v1128 = vmul.f32 %v1114, %v152
  %v1129 = vmul.f32 %v1106, %v156
  %v1130 = vmul.f32 %v1098, %v160
  %v1131 = vmul.f32 %v1090, %v164
  %v1132 = vmul.f32 %v1115, %v152
  %v1133 = vmul.f32 %v1107, %v156
  %v1134 = vmul.f32 %v1099, %v160
  %v1135 = vmul.f32 %v1091, %v164
  %v1136 = vmul.f32 %v1116, %v152
  %v1137 = vmul.f32 %v1108, %v156
  %v1138 = vmul.f32 %v1100, %v160
  %v1139 = vmul.f32 %v1092, %v164
  %v1140 = vmul.f32 %v1117, %v152
  %v1141 = vmul.f32 %v1109, %v156
  %v1142 = vmul.f32 %v1101, %v160
  %v1143 = vmul.f32 %v1093, %v164
  %v1144 = vmul.f32 %v1118, %v152
  %v1145 = vmul.f32 %v1110, %v156
  %v1146 = vmul.f32 %v1102, %v160
  %v1147 = vmul.f32 %v1094, %v164
  %v1148 = vmul.f32 %v1119, %v152
  %v1149 = vmul.f32 %v1111, %v156
  %v1150 = vmul.f32 %v1103, %v160
  %v1151 = vmul.f32 %v1095, %v164
  %1152 = vrot.lane.b32.xlu0 %v608, 127
  %v1153 = vpop.permute.xlu0 %1152
  %1154 = vrot.lane.b32.xlu0 %v612, 127
  %v1155 = vpop.permute.xlu0 %1154
  %1156 = vrot.lane.b32.xlu0 %v616, 127
  %v1157 = vpop.permute.xlu0 %1156
  %1158 = vrot.lane.b32.xlu0 %v620, 127
  %v1159 = vpop.permute.xlu0 %1158
  %1160 = vrot.lane.b32.xlu0 %v624, 127
  %v1161 = vpop.permute.xlu0 %1160
  %1162 = vrot.lane.b32.xlu0 %v628, 127
  %v1163 = vpop.permute.xlu0 %1162
  %1164 = vrot.lane.b32.xlu0 %v632, 127
  %v1165 = vpop.permute.xlu0 %1164
  %1166 = vrot.lane.b32.xlu0 %v636, 127
  %v1167 = vpop.permute.xlu0 %1166
  %1168 = vrot.lane.b32.xlu0 %v609, 127
  %v1169 = vpop.permute.xlu0 %1168
  %1170 = vrot.lane.b32.xlu0 %v613, 127
  %v1171 = vpop.permute.xlu0 %1170
  %1172 = vrot.lane.b32.xlu0 %v617, 127
  %v1173 = vpop.permute.xlu0 %1172
  %1174 = vrot.lane.b32.xlu0 %v621, 127
  %v1175 = vpop.permute.xlu0 %1174
  %1176 = vrot.lane.b32.xlu0 %v625, 127
  %v1177 = vpop.permute.xlu0 %1176
  %1178 = vrot.lane.b32.xlu0 %v629, 127
  %v1179 = vpop.permute.xlu0 %1178
  %1180 = vrot.lane.b32.xlu0 %v633, 127
  %v1181 = vpop.permute.xlu0 %1180
  %1182 = vrot.lane.b32.xlu0 %v637, 127
  %v1183 = vpop.permute.xlu0 %1182
  %1184 = vrot.lane.b32.xlu0 %v610, 127
  %v1185 = vpop.permute.xlu0 %1184
  %1186 = vrot.lane.b32.xlu0 %v614, 127
  %v1187 = vpop.permute.xlu0 %1186
  %1188 = vrot.lane.b32.xlu0 %v618, 127
  %v1189 = vpop.permute.xlu0 %1188
  %1190 = vrot.lane.b32.xlu0 %v622, 127
  %v1191 = vpop.permute.xlu0 %1190
  %1192 = vrot.lane.b32.xlu0 %v626, 127
  %v1193 = vpop.permute.xlu0 %1192
  %1194 = vrot.lane.b32.xlu0 %v630, 127
  %v1195 = vpop.permute.xlu0 %1194
  %1196 = vrot.lane.b32.xlu0 %v634, 127
  %v1197 = vpop.permute.xlu0 %1196
  %1198 = vrot.lane.b32.xlu0 %v638, 127
  %v1199 = vpop.permute.xlu0 %1198
  %1200 = vrot.lane.b32.xlu0 %v611, 127
  %v1201 = vpop.permute.xlu0 %1200
  %1202 = vrot.lane.b32.xlu0 %v615, 127
  %v1203 = vpop.permute.xlu0 %1202
  %1204 = vrot.lane.b32.xlu0 %v619, 127
  %v1205 = vpop.permute.xlu0 %1204
  %1206 = vrot.lane.b32.xlu0 %v623, 127
  %v1207 = vpop.permute.xlu0 %1206
  %1208 = vrot.lane.b32.xlu0 %v627, 127
  %v1209 = vpop.permute.xlu0 %1208
  %1210 = vrot.lane.b32.xlu0 %v631, 127
  %v1211 = vpop.permute.xlu0 %1210
  %1212 = vrot.lane.b32.xlu0 %v635, 127
  %v1213 = vpop.permute.xlu0 %1212
  %1214 = vrot.lane.b32.xlu0 %v639, 127
  %v1215 = vpop.permute.xlu0 %1214
  %v1216 = vsel %vm177, %v1185, %v1201
  %v1217 = vsel %vm177, %v1187, %v1203
  %v1218 = vsel %vm177, %v1189, %v1205
  %v1219 = vsel %vm177, %v1191, %v1207
  %v1220 = vsel %vm177, %v1193, %v1209
  %v1221 = vsel %vm177, %v1195, %v1211
  %v1222 = vsel %vm177, %v1197, %v1213
  %v1223 = vsel %vm177, %v1199, %v1215
  %v1224 = vsel %vm177, %v1169, %v1185
  %v1225 = vsel %vm177, %v1171, %v1187
  %v1226 = vsel %vm177, %v1173, %v1189
  %v1227 = vsel %vm177, %v1175, %v1191
  %v1228 = vsel %vm177, %v1177, %v1193
  %v1229 = vsel %vm177, %v1179, %v1195
  %v1230 = vsel %vm177, %v1181, %v1197
  %v1231 = vsel %vm177, %v1183, %v1199
  %v1232 = vsel %vm177, %v1153, %v1169
  %v1233 = vsel %vm177, %v1155, %v1171
  %v1234 = vsel %vm177, %v1157, %v1173
  %v1235 = vsel %vm177, %v1159, %v1175
  %v1236 = vsel %vm177, %v1161, %v1177
  %v1237 = vsel %vm177, %v1163, %v1179
  %v1238 = vsel %vm177, %v1165, %v1181
  %v1239 = vsel %vm177, %v1167, %v1183
  %v1240 = vsel %vm177, %v1201, %v1153
  %v1241 = vsel %vm177, %v1203, %v1155
  %v1242 = vsel %vm177, %v1205, %v1157
  %v1243 = vsel %vm177, %v1207, %v1159
  %v1244 = vsel %vm177, %v1209, %v1161
  %v1245 = vsel %vm177, %v1211, %v1163
  %v1246 = vsel %vm177, %v1213, %v1165
  %v1247 = vsel %vm177, %v1215, %v1167
  %v1248 = vmul.f32 %v1232, %v185
  %v1249 = vmul.f32 %v1224, %v189
  %v1250 = vmul.f32 %v1216, %v193
  %v1251 = vmul.f32 %v1240, %v197
  %v1252 = vmul.f32 %v1233, %v185
  %v1253 = vmul.f32 %v1225, %v189
  %v1254 = vmul.f32 %v1217, %v193
  %v1255 = vmul.f32 %v1241, %v197
  %v1256 = vmul.f32 %v1234, %v185
  %v1257 = vmul.f32 %v1226, %v189
  %v1258 = vmul.f32 %v1218, %v193
  %v1259 = vmul.f32 %v1242, %v197
  %v1260 = vmul.f32 %v1235, %v185
  %v1261 = vmul.f32 %v1227, %v189
  %v1262 = vmul.f32 %v1219, %v193
  %v1263 = vmul.f32 %v1243, %v197
  %v1264 = vmul.f32 %v1236, %v185
  %v1265 = vmul.f32 %v1228, %v189
  %v1266 = vmul.f32 %v1220, %v193
  %v1267 = vmul.f32 %v1244, %v197
  %v1268 = vmul.f32 %v1237, %v185
  %v1269 = vmul.f32 %v1229, %v189
  %v1270 = vmul.f32 %v1221, %v193
  %v1271 = vmul.f32 %v1245, %v197
  %v1272 = vmul.f32 %v1238, %v185
  %v1273 = vmul.f32 %v1230, %v189
  %v1274 = vmul.f32 %v1222, %v193
  %v1275 = vmul.f32 %v1246, %v197
  %v1276 = vmul.f32 %v1239, %v185
  %v1277 = vmul.f32 %v1231, %v189
  %v1278 = vmul.f32 %v1223, %v193
  %v1279 = vmul.f32 %v1247, %v197
  %1280 = vrot.lane.b32.xlu0 %v608, 113
  %v1281 = vpop.permute.xlu0 %1280
  %1282 = vrot.lane.b32.xlu0 %v612, 113
  %v1283 = vpop.permute.xlu0 %1282
  %1284 = vrot.lane.b32.xlu0 %v616, 113
  %v1285 = vpop.permute.xlu0 %1284
  %1286 = vrot.lane.b32.xlu0 %v620, 113
  %v1287 = vpop.permute.xlu0 %1286
  %1288 = vrot.lane.b32.xlu0 %v624, 113
  %v1289 = vpop.permute.xlu0 %1288
  %1290 = vrot.lane.b32.xlu0 %v628, 113
  %v1291 = vpop.permute.xlu0 %1290
  %1292 = vrot.lane.b32.xlu0 %v632, 113
  %v1293 = vpop.permute.xlu0 %1292
  %1294 = vrot.lane.b32.xlu0 %v636, 113
  %v1295 = vpop.permute.xlu0 %1294
  %1296 = vrot.lane.b32.xlu0 %v609, 113
  %v1297 = vpop.permute.xlu0 %1296
  %1298 = vrot.lane.b32.xlu0 %v613, 113
  %v1299 = vpop.permute.xlu0 %1298
  %1300 = vrot.lane.b32.xlu0 %v617, 113
  %v1301 = vpop.permute.xlu0 %1300
  %1302 = vrot.lane.b32.xlu0 %v621, 113
  %v1303 = vpop.permute.xlu0 %1302
  %1304 = vrot.lane.b32.xlu0 %v625, 113
  %v1305 = vpop.permute.xlu0 %1304
  %1306 = vrot.lane.b32.xlu0 %v629, 113
  %v1307 = vpop.permute.xlu0 %1306
  %1308 = vrot.lane.b32.xlu0 %v633, 113
  %v1309 = vpop.permute.xlu0 %1308
  %1310 = vrot.lane.b32.xlu0 %v637, 113
  %v1311 = vpop.permute.xlu0 %1310
  %1312 = vrot.lane.b32.xlu0 %v610, 113
  %v1313 = vpop.permute.xlu0 %1312
  %1314 = vrot.lane.b32.xlu0 %v614, 113
  %v1315 = vpop.permute.xlu0 %1314
  %1316 = vrot.lane.b32.xlu0 %v618, 113
  %v1317 = vpop.permute.xlu0 %1316
  %1318 = vrot.lane.b32.xlu0 %v622, 113
  %v1319 = vpop.permute.xlu0 %1318
  %1320 = vrot.lane.b32.xlu0 %v626, 113
  %v1321 = vpop.permute.xlu0 %1320
  %1322 = vrot.lane.b32.xlu0 %v630, 113
  %v1323 = vpop.permute.xlu0 %1322
  %1324 = vrot.lane.b32.xlu0 %v634, 113
  %v1325 = vpop.permute.xlu0 %1324
  %1326 = vrot.lane.b32.xlu0 %v638, 113
  %v1327 = vpop.permute.xlu0 %1326
  %1328 = vrot.lane.b32.xlu0 %v611, 113
  %v1329 = vpop.permute.xlu0 %1328
  %1330 = vrot.lane.b32.xlu0 %v615, 113
  %v1331 = vpop.permute.xlu0 %1330
  %1332 = vrot.lane.b32.xlu0 %v619, 113
  %v1333 = vpop.permute.xlu0 %1332
  %1334 = vrot.lane.b32.xlu0 %v623, 113
  %v1335 = vpop.permute.xlu0 %1334
  %1336 = vrot.lane.b32.xlu0 %v627, 113
  %v1337 = vpop.permute.xlu0 %1336
  %1338 = vrot.lane.b32.xlu0 %v631, 113
  %v1339 = vpop.permute.xlu0 %1338
  %1340 = vrot.lane.b32.xlu0 %v635, 113
  %v1341 = vpop.permute.xlu0 %1340
  %1342 = vrot.lane.b32.xlu0 %v639, 113
  %v1343 = vpop.permute.xlu0 %1342
  %v1344 = vsel %vm210, %v1313, %v1329
  %v1345 = vsel %vm210, %v1315, %v1331
  %v1346 = vsel %vm210, %v1317, %v1333
  %v1347 = vsel %vm210, %v1319, %v1335
  %v1348 = vsel %vm210, %v1321, %v1337
  %v1349 = vsel %vm210, %v1323, %v1339
  %v1350 = vsel %vm210, %v1325, %v1341
  %v1351 = vsel %vm210, %v1327, %v1343
  %v1352 = vsel %vm210, %v1297, %v1313
  %v1353 = vsel %vm210, %v1299, %v1315
  %v1354 = vsel %vm210, %v1301, %v1317
  %v1355 = vsel %vm210, %v1303, %v1319
  %v1356 = vsel %vm210, %v1305, %v1321
  %v1357 = vsel %vm210, %v1307, %v1323
  %v1358 = vsel %vm210, %v1309, %v1325
  %v1359 = vsel %vm210, %v1311, %v1327
  %v1360 = vsel %vm210, %v1281, %v1297
  %v1361 = vsel %vm210, %v1283, %v1299
  %v1362 = vsel %vm210, %v1285, %v1301
  %v1363 = vsel %vm210, %v1287, %v1303
  %v1364 = vsel %vm210, %v1289, %v1305
  %v1365 = vsel %vm210, %v1291, %v1307
  %v1366 = vsel %vm210, %v1293, %v1309
  %v1367 = vsel %vm210, %v1295, %v1311
  %v1368 = vsel %vm210, %v1329, %v1281
  %v1369 = vsel %vm210, %v1331, %v1283
  %v1370 = vsel %vm210, %v1333, %v1285
  %v1371 = vsel %vm210, %v1335, %v1287
  %v1372 = vsel %vm210, %v1337, %v1289
  %v1373 = vsel %vm210, %v1339, %v1291
  %v1374 = vsel %vm210, %v1341, %v1293
  %v1375 = vsel %vm210, %v1343, %v1295
  %v1376 = vmul.f32 %v1360, %v218
  %v1377 = vmul.f32 %v1352, %v222
  %v1378 = vmul.f32 %v1344, %v226
  %v1379 = vmul.f32 %v1368, %v230
  %v1380 = vmul.f32 %v1361, %v218
  %v1381 = vmul.f32 %v1353, %v222
  %v1382 = vmul.f32 %v1345, %v226
  %v1383 = vmul.f32 %v1369, %v230
  %v1384 = vmul.f32 %v1362, %v218
  %v1385 = vmul.f32 %v1354, %v222
  %v1386 = vmul.f32 %v1346, %v226
  %v1387 = vmul.f32 %v1370, %v230
  %v1388 = vmul.f32 %v1363, %v218
  %v1389 = vmul.f32 %v1355, %v222
  %v1390 = vmul.f32 %v1347, %v226
  %v1391 = vmul.f32 %v1371, %v230
  %v1392 = vmul.f32 %v1364, %v218
  %v1393 = vmul.f32 %v1356, %v222
  %v1394 = vmul.f32 %v1348, %v226
  %v1395 = vmul.f32 %v1372, %v230
  %v1396 = vmul.f32 %v1365, %v218
  %v1397 = vmul.f32 %v1357, %v222
  %v1398 = vmul.f32 %v1349, %v226
  %v1399 = vmul.f32 %v1373, %v230
  %v1400 = vmul.f32 %v1366, %v218
  %v1401 = vmul.f32 %v1358, %v222
  %v1402 = vmul.f32 %v1350, %v226
  %v1403 = vmul.f32 %v1374, %v230
  %v1404 = vmul.f32 %v1367, %v218
  %v1405 = vmul.f32 %v1359, %v222
  %v1406 = vmul.f32 %v1351, %v226
  %v1407 = vmul.f32 %v1375, %v230
  %1408 = vrot.lane.b32.xlu0 %v608, 112
  %v1409 = vpop.permute.xlu0 %1408
  %1410 = vrot.lane.b32.xlu0 %v612, 112
  %v1411 = vpop.permute.xlu0 %1410
  %1412 = vrot.lane.b32.xlu0 %v616, 112
  %v1413 = vpop.permute.xlu0 %1412
  %1414 = vrot.lane.b32.xlu0 %v620, 112
  %v1415 = vpop.permute.xlu0 %1414
  %1416 = vrot.lane.b32.xlu0 %v624, 112
  %v1417 = vpop.permute.xlu0 %1416
  %1418 = vrot.lane.b32.xlu0 %v628, 112
  %v1419 = vpop.permute.xlu0 %1418
  %1420 = vrot.lane.b32.xlu0 %v632, 112
  %v1421 = vpop.permute.xlu0 %1420
  %1422 = vrot.lane.b32.xlu0 %v636, 112
  %v1423 = vpop.permute.xlu0 %1422
  %1424 = vrot.lane.b32.xlu0 %v609, 112
  %v1425 = vpop.permute.xlu0 %1424
  %1426 = vrot.lane.b32.xlu0 %v613, 112
  %v1427 = vpop.permute.xlu0 %1426
  %1428 = vrot.lane.b32.xlu0 %v617, 112
  %v1429 = vpop.permute.xlu0 %1428
  %1430 = vrot.lane.b32.xlu0 %v621, 112
  %v1431 = vpop.permute.xlu0 %1430
  %1432 = vrot.lane.b32.xlu0 %v625, 112
  %v1433 = vpop.permute.xlu0 %1432
  %1434 = vrot.lane.b32.xlu0 %v629, 112
  %v1435 = vpop.permute.xlu0 %1434
  %1436 = vrot.lane.b32.xlu0 %v633, 112
  %v1437 = vpop.permute.xlu0 %1436
  %1438 = vrot.lane.b32.xlu0 %v637, 112
  %v1439 = vpop.permute.xlu0 %1438
  %1440 = vrot.lane.b32.xlu0 %v610, 112
  %v1441 = vpop.permute.xlu0 %1440
  %1442 = vrot.lane.b32.xlu0 %v614, 112
  %v1443 = vpop.permute.xlu0 %1442
  %1444 = vrot.lane.b32.xlu0 %v618, 112
  %v1445 = vpop.permute.xlu0 %1444
  %1446 = vrot.lane.b32.xlu0 %v622, 112
  %v1447 = vpop.permute.xlu0 %1446
  %1448 = vrot.lane.b32.xlu0 %v626, 112
  %v1449 = vpop.permute.xlu0 %1448
  %1450 = vrot.lane.b32.xlu0 %v630, 112
  %v1451 = vpop.permute.xlu0 %1450
  %1452 = vrot.lane.b32.xlu0 %v634, 112
  %v1453 = vpop.permute.xlu0 %1452
  %1454 = vrot.lane.b32.xlu0 %v638, 112
  %v1455 = vpop.permute.xlu0 %1454
  %1456 = vrot.lane.b32.xlu0 %v611, 112
  %v1457 = vpop.permute.xlu0 %1456
  %1458 = vrot.lane.b32.xlu0 %v615, 112
  %v1459 = vpop.permute.xlu0 %1458
  %1460 = vrot.lane.b32.xlu0 %v619, 112
  %v1461 = vpop.permute.xlu0 %1460
  %1462 = vrot.lane.b32.xlu0 %v623, 112
  %v1463 = vpop.permute.xlu0 %1462
  %1464 = vrot.lane.b32.xlu0 %v627, 112
  %v1465 = vpop.permute.xlu0 %1464
  %1466 = vrot.lane.b32.xlu0 %v631, 112
  %v1467 = vpop.permute.xlu0 %1466
  %1468 = vrot.lane.b32.xlu0 %v635, 112
  %v1469 = vpop.permute.xlu0 %1468
  %1470 = vrot.lane.b32.xlu0 %v639, 112
  %v1471 = vpop.permute.xlu0 %1470
  %v1472 = vsel %vm243, %v1441, %v1457
  %v1473 = vsel %vm243, %v1443, %v1459
  %v1474 = vsel %vm243, %v1445, %v1461
  %v1475 = vsel %vm243, %v1447, %v1463
  %v1476 = vsel %vm243, %v1449, %v1465
  %v1477 = vsel %vm243, %v1451, %v1467
  %v1478 = vsel %vm243, %v1453, %v1469
  %v1479 = vsel %vm243, %v1455, %v1471
  %v1480 = vsel %vm243, %v1425, %v1441
  %v1481 = vsel %vm243, %v1427, %v1443
  %v1482 = vsel %vm243, %v1429, %v1445
  %v1483 = vsel %vm243, %v1431, %v1447
  %v1484 = vsel %vm243, %v1433, %v1449
  %v1485 = vsel %vm243, %v1435, %v1451
  %v1486 = vsel %vm243, %v1437, %v1453
  %v1487 = vsel %vm243, %v1439, %v1455
  %v1488 = vsel %vm243, %v1409, %v1425
  %v1489 = vsel %vm243, %v1411, %v1427
  %v1490 = vsel %vm243, %v1413, %v1429
  %v1491 = vsel %vm243, %v1415, %v1431
  %v1492 = vsel %vm243, %v1417, %v1433
  %v1493 = vsel %vm243, %v1419, %v1435
  %v1494 = vsel %vm243, %v1421, %v1437
  %v1495 = vsel %vm243, %v1423, %v1439
  %v1496 = vsel %vm243, %v1457, %v1409
  %v1497 = vsel %vm243, %v1459, %v1411
  %v1498 = vsel %vm243, %v1461, %v1413
  %v1499 = vsel %vm243, %v1463, %v1415
  %v1500 = vsel %vm243, %v1465, %v1417
  %v1501 = vsel %vm243, %v1467, %v1419
  %v1502 = vsel %vm243, %v1469, %v1421
  %v1503 = vsel %vm243, %v1471, %v1423
  %v1504 = vmul.f32 %v1488, %v251
  %v1505 = vmul.f32 %v1480, %v255
  %v1506 = vmul.f32 %v1472, %v259
  %v1507 = vmul.f32 %v1496, %v263
  %v1508 = vmul.f32 %v1489, %v251
  %v1509 = vmul.f32 %v1481, %v255
  %v1510 = vmul.f32 %v1473, %v259
  %v1511 = vmul.f32 %v1497, %v263
  %v1512 = vmul.f32 %v1490, %v251
  %v1513 = vmul.f32 %v1482, %v255
  %v1514 = vmul.f32 %v1474, %v259
  %v1515 = vmul.f32 %v1498, %v263
  %v1516 = vmul.f32 %v1491, %v251
  %v1517 = vmul.f32 %v1483, %v255
  %v1518 = vmul.f32 %v1475, %v259
  %v1519 = vmul.f32 %v1499, %v263
  %v1520 = vmul.f32 %v1492, %v251
  %v1521 = vmul.f32 %v1484, %v255
  %v1522 = vmul.f32 %v1476, %v259
  %v1523 = vmul.f32 %v1500, %v263
  %v1524 = vmul.f32 %v1493, %v251
  %v1525 = vmul.f32 %v1485, %v255
  %v1526 = vmul.f32 %v1477, %v259
  %v1527 = vmul.f32 %v1501, %v263
  %v1528 = vmul.f32 %v1494, %v251
  %v1529 = vmul.f32 %v1486, %v255
  %v1530 = vmul.f32 %v1478, %v259
  %v1531 = vmul.f32 %v1502, %v263
  %v1532 = vmul.f32 %v1495, %v251
  %v1533 = vmul.f32 %v1487, %v255
  %v1534 = vmul.f32 %v1479, %v259
  %v1535 = vmul.f32 %v1503, %v263
  %1536 = vrot.lane.b32.xlu0 %v608, 111
  %v1537 = vpop.permute.xlu0 %1536
  %1538 = vrot.lane.b32.xlu0 %v612, 111
  %v1539 = vpop.permute.xlu0 %1538
  %1540 = vrot.lane.b32.xlu0 %v616, 111
  %v1541 = vpop.permute.xlu0 %1540
  %1542 = vrot.lane.b32.xlu0 %v620, 111
  %v1543 = vpop.permute.xlu0 %1542
  %1544 = vrot.lane.b32.xlu0 %v624, 111
  %v1545 = vpop.permute.xlu0 %1544
  %1546 = vrot.lane.b32.xlu0 %v628, 111
  %v1547 = vpop.permute.xlu0 %1546
  %1548 = vrot.lane.b32.xlu0 %v632, 111
  %v1549 = vpop.permute.xlu0 %1548
  %1550 = vrot.lane.b32.xlu0 %v636, 111
  %v1551 = vpop.permute.xlu0 %1550
  %1552 = vrot.lane.b32.xlu0 %v609, 111
  %v1553 = vpop.permute.xlu0 %1552
  %1554 = vrot.lane.b32.xlu0 %v613, 111
  %v1555 = vpop.permute.xlu0 %1554
  %1556 = vrot.lane.b32.xlu0 %v617, 111
  %v1557 = vpop.permute.xlu0 %1556
  %1558 = vrot.lane.b32.xlu0 %v621, 111
  %v1559 = vpop.permute.xlu0 %1558
  %1560 = vrot.lane.b32.xlu0 %v625, 111
  %v1561 = vpop.permute.xlu0 %1560
  %1562 = vrot.lane.b32.xlu0 %v629, 111
  %v1563 = vpop.permute.xlu0 %1562
  %1564 = vrot.lane.b32.xlu0 %v633, 111
  %v1565 = vpop.permute.xlu0 %1564
  %1566 = vrot.lane.b32.xlu0 %v637, 111
  %v1567 = vpop.permute.xlu0 %1566
  %1568 = vrot.lane.b32.xlu0 %v610, 111
  %v1569 = vpop.permute.xlu0 %1568
  %1570 = vrot.lane.b32.xlu0 %v614, 111
  %v1571 = vpop.permute.xlu0 %1570
  %1572 = vrot.lane.b32.xlu0 %v618, 111
  %v1573 = vpop.permute.xlu0 %1572
  %1574 = vrot.lane.b32.xlu0 %v622, 111
  %v1575 = vpop.permute.xlu0 %1574
  %1576 = vrot.lane.b32.xlu0 %v626, 111
  %v1577 = vpop.permute.xlu0 %1576
  %1578 = vrot.lane.b32.xlu0 %v630, 111
  %v1579 = vpop.permute.xlu0 %1578
  %1580 = vrot.lane.b32.xlu0 %v634, 111
  %v1581 = vpop.permute.xlu0 %1580
  %1582 = vrot.lane.b32.xlu0 %v638, 111
  %v1583 = vpop.permute.xlu0 %1582
  %1584 = vrot.lane.b32.xlu0 %v611, 111
  %v1585 = vpop.permute.xlu0 %1584
  %1586 = vrot.lane.b32.xlu0 %v615, 111
  %v1587 = vpop.permute.xlu0 %1586
  %1588 = vrot.lane.b32.xlu0 %v619, 111
  %v1589 = vpop.permute.xlu0 %1588
  %1590 = vrot.lane.b32.xlu0 %v623, 111
  %v1591 = vpop.permute.xlu0 %1590
  %1592 = vrot.lane.b32.xlu0 %v627, 111
  %v1593 = vpop.permute.xlu0 %1592
  %1594 = vrot.lane.b32.xlu0 %v631, 111
  %v1595 = vpop.permute.xlu0 %1594
  %1596 = vrot.lane.b32.xlu0 %v635, 111
  %v1597 = vpop.permute.xlu0 %1596
  %1598 = vrot.lane.b32.xlu0 %v639, 111
  %v1599 = vpop.permute.xlu0 %1598
  %v1600 = vsel %vm276, %v1569, %v1585
  %v1601 = vsel %vm276, %v1571, %v1587
  %v1602 = vsel %vm276, %v1573, %v1589
  %v1603 = vsel %vm276, %v1575, %v1591
  %v1604 = vsel %vm276, %v1577, %v1593
  %v1605 = vsel %vm276, %v1579, %v1595
  %v1606 = vsel %vm276, %v1581, %v1597
  %v1607 = vsel %vm276, %v1583, %v1599
  %v1608 = vsel %vm276, %v1553, %v1569
  %v1609 = vsel %vm276, %v1555, %v1571
  %v1610 = vsel %vm276, %v1557, %v1573
  %v1611 = vsel %vm276, %v1559, %v1575
  %v1612 = vsel %vm276, %v1561, %v1577
  %v1613 = vsel %vm276, %v1563, %v1579
  %v1614 = vsel %vm276, %v1565, %v1581
  %v1615 = vsel %vm276, %v1567, %v1583
  %v1616 = vsel %vm276, %v1537, %v1553
  %v1617 = vsel %vm276, %v1539, %v1555
  %v1618 = vsel %vm276, %v1541, %v1557
  %v1619 = vsel %vm276, %v1543, %v1559
  %v1620 = vsel %vm276, %v1545, %v1561
  %v1621 = vsel %vm276, %v1547, %v1563
  %v1622 = vsel %vm276, %v1549, %v1565
  %v1623 = vsel %vm276, %v1551, %v1567
  %v1624 = vsel %vm276, %v1585, %v1537
  %v1625 = vsel %vm276, %v1587, %v1539
  %v1626 = vsel %vm276, %v1589, %v1541
  %v1627 = vsel %vm276, %v1591, %v1543
  %v1628 = vsel %vm276, %v1593, %v1545
  %v1629 = vsel %vm276, %v1595, %v1547
  %v1630 = vsel %vm276, %v1597, %v1549
  %v1631 = vsel %vm276, %v1599, %v1551
  %v1632 = vmul.f32 %v1616, %v284
  %v1633 = vmul.f32 %v1608, %v288
  %v1634 = vmul.f32 %v1600, %v292
  %v1635 = vmul.f32 %v1624, %v296
  %v1636 = vmul.f32 %v1617, %v284
  %v1637 = vmul.f32 %v1609, %v288
  %v1638 = vmul.f32 %v1601, %v292
  %v1639 = vmul.f32 %v1625, %v296
  %v1640 = vmul.f32 %v1618, %v284
  %v1641 = vmul.f32 %v1610, %v288
  %v1642 = vmul.f32 %v1602, %v292
  %v1643 = vmul.f32 %v1626, %v296
  %v1644 = vmul.f32 %v1619, %v284
  %v1645 = vmul.f32 %v1611, %v288
  %v1646 = vmul.f32 %v1603, %v292
  %v1647 = vmul.f32 %v1627, %v296
  %v1648 = vmul.f32 %v1620, %v284
  %v1649 = vmul.f32 %v1612, %v288
  %v1650 = vmul.f32 %v1604, %v292
  %v1651 = vmul.f32 %v1628, %v296
  %v1652 = vmul.f32 %v1621, %v284
  %v1653 = vmul.f32 %v1613, %v288
  %v1654 = vmul.f32 %v1605, %v292
  %v1655 = vmul.f32 %v1629, %v296
  %v1656 = vmul.f32 %v1622, %v284
  %v1657 = vmul.f32 %v1614, %v288
  %v1658 = vmul.f32 %v1606, %v292
  %v1659 = vmul.f32 %v1630, %v296
  %v1660 = vmul.f32 %v1623, %v284
  %v1661 = vmul.f32 %v1615, %v288
  %v1662 = vmul.f32 %v1607, %v292
  %v1663 = vmul.f32 %v1631, %v296
  %v1664 = vld [vmem:[%s4] sm:$0x77]
  %v1665 = vld [vmem:[%s4 + $0x8] sm:$0x77]
  %v1666 = vld [vmem:[%s4 + $0x10] sm:$0x7]
  %v1667 = vld [vmem:[%s5] sm:$0x7]
  %1669 = vset.pattern.permute.xlu0 0
  %1670 = vperm.xlu0 %1669, %v1667
  %v1671 = vpop.permute.xlu0 %1670
  %v1676 = vcombine.high %v1664, %v1664
  %v1677 = vcombine.high %v1665, %v1665
  %vm1680 = vcmask 523264
  %v1681 = vsel %vm1680, %v1666, 0
  %1683 = vmatprep.subr.mxu0 %v737
  %1684 = vmatpush1.msra.mxu0 %v736
  %1685 = vmatprep.subr.mxu0 %v741
  %1686 = vmatpush1.msra.mxu0 %v740
  %1687 = vmatprep.subr.mxu0 %v745
  %1688 = vmatpush1.msra.mxu0 %v744
  %1689 = vmatprep.subr.mxu0 %v749
  %1690 = vmatpush1.msra.mxu0 %v748
  %1691 = vmatprep.subr.mxu0 %v753
  %1692 = vmatpush1.msra.mxu0 %v752
  %1693 = vmatprep.subr.mxu0 %v757
  %1694 = vmatpush1.msra.mxu0 %v756
  %1695 = vmatprep.subr.mxu0 %v761
  %1696 = vmatpush1.msra.mxu0 %v760
  %1697 = vmatprep.subr.mxu0 %v765
  %1698 = vmatpush1.msra.mxu0 %v764
  %1699 = vmatprep.subr.mxu0 %v865
  %1700 = vmatpush1.msra.mxu0 %v864
  %1701 = vmatprep.subr.mxu0 %v869
  %1702 = vmatpush1.msra.mxu0 %v868
  %1703 = vmatprep.subr.mxu0 %v873
  %1704 = vmatpush1.msra.mxu0 %v872
  %1705 = vmatprep.subr.mxu0 %v877
  %1706 = vmatpush1.msra.mxu0 %v876
  %1707 = vmatprep.subr.mxu0 %v881
  %1708 = vmatpush1.msra.mxu0 %v880
  %1709 = vmatprep.subr.mxu0 %v885
  %1710 = vmatpush1.msra.mxu0 %v884
  %1711 = vmatprep.subr.mxu0 %v889
  %1712 = vmatpush1.msra.mxu0 %v888
  %1713 = vmatprep.subr.mxu0 %v893
  %1714 = vmatpush1.msra.mxu0 %v892
  %1715 = vmatprep.subr.mxu0 %v993
  %1716 = vmatpush1.msra.mxu0 %v992
  %1717 = vmatprep.subr.mxu0 %v997
  %1718 = vmatpush1.msra.mxu0 %v996
  %1719 = vmatprep.subr.mxu0 %v1001
  %1720 = vmatpush1.msra.mxu0 %v1000
  %1721 = vmatprep.subr.mxu0 %v1005
  %1722 = vmatpush1.msra.mxu0 %v1004
  %1723 = vmatprep.subr.mxu0 %v1009
  %1724 = vmatpush1.msra.mxu0 %v1008
  %1725 = vmatprep.subr.mxu0 %v1013
  %1726 = vmatpush1.msra.mxu0 %v1012
  %1727 = vmatprep.subr.mxu0 %v1017
  %1728 = vmatpush1.msra.mxu0 %v1016
  %1729 = vmatprep.subr.mxu0 %v1021
  %1730 = vmatpush1.msra.mxu0 %v1020
  %1731 = vmatprep.subr.mxu0 %v1121
  %1732 = vmatpush1.msra.mxu0 %v1120
  %1733 = vmatprep.subr.mxu0 %v1125
  %1734 = vmatpush1.msra.mxu0 %v1124
  %1735 = vmatprep.subr.mxu0 %v1129
  %1736 = vmatpush1.msra.mxu0 %v1128
  %1737 = vmatprep.subr.mxu0 %v1133
  %1738 = vmatpush1.msra.mxu0 %v1132
  %1739 = vmatprep.subr.mxu0 %v1137
  %1740 = vmatpush1.msra.mxu0 %v1136
  %1741 = vmatprep.subr.mxu0 %v1141
  %1742 = vmatpush1.msra.mxu0 %v1140
  %1743 = vmatprep.subr.mxu0 %v1145
  %1744 = vmatpush1.msra.mxu0 %v1144
  %1745 = vmatprep.subr.mxu0 %v1149
  %1746 = vmatpush1.msra.mxu0 %v1148
  %1747 = vmatprep.mubr.f32.mxu0 %v1676
  %1748 = vmatmul.mubr.f32.gmra.mrb[0].mxu0 %v1664
  %v1749 = vpop.f32.mrb[0].mxu0
  %v1750 = vadd.f32 %v1671, %v1749
  %v1751 = vpop.f32.mrb[0].mxu0
  %v1752 = vadd.f32 %v1671, %v1751
  %1753 = vdwg.mxu0
  %1754 = vmatprep.subr.mxu0 %v609
  %1755 = vmatpush1.msra.mxu0 %v608
  %1756 = vmatprep.subr.mxu0 %v613
  %1757 = vmatpush1.msra.mxu0 %v612
  %1758 = vmatprep.subr.mxu0 %v617
  %1759 = vmatpush1.msra.mxu0 %v616
  %1760 = vmatprep.subr.mxu0 %v621
  %1761 = vmatpush1.msra.mxu0 %v620
  %1762 = vmatprep.subr.mxu0 %v625
  %1763 = vmatpush1.msra.mxu0 %v624
  %1764 = vmatprep.subr.mxu0 %v629
  %1765 = vmatpush1.msra.mxu0 %v628
  %1766 = vmatprep.subr.mxu0 %v633
  %1767 = vmatpush1.msra.mxu0 %v632
  %1768 = vmatprep.subr.mxu0 %v637
  %1769 = vmatpush1.msra.mxu0 %v636
  %1770 = vmatprep.subr.mxu0 %v1249
  %1771 = vmatpush1.msra.mxu0 %v1248
  %1772 = vmatprep.subr.mxu0 %v1253
  %1773 = vmatpush1.msra.mxu0 %v1252
  %1774 = vmatprep.subr.mxu0 %v1257
  %1775 = vmatpush1.msra.mxu0 %v1256
  %1776 = vmatprep.subr.mxu0 %v1261
  %1777 = vmatpush1.msra.mxu0 %v1260
  %1778 = vmatprep.subr.mxu0 %v1265
  %1779 = vmatpush1.msra.mxu0 %v1264
  %1780 = vmatprep.subr.mxu0 %v1269
  %1781 = vmatpush1.msra.mxu0 %v1268
  %1782 = vmatprep.subr.mxu0 %v1273
  %1783 = vmatpush1.msra.mxu0 %v1272
  %1784 = vmatprep.subr.mxu0 %v1277
  %1785 = vmatpush1.msra.mxu0 %v1276
  %1786 = vmatprep.subr.mxu0 %v1377
  %1787 = vmatpush1.msra.mxu0 %v1376
  %1788 = vmatprep.subr.mxu0 %v1381
  %1789 = vmatpush1.msra.mxu0 %v1380
  %1790 = vmatprep.subr.mxu0 %v1385
  %1791 = vmatpush1.msra.mxu0 %v1384
  %1792 = vmatprep.subr.mxu0 %v1389
  %1793 = vmatpush1.msra.mxu0 %v1388
  %1794 = vmatprep.subr.mxu0 %v1393
  %1795 = vmatpush1.msra.mxu0 %v1392
  %1796 = vmatprep.subr.mxu0 %v1397
  %1797 = vmatpush1.msra.mxu0 %v1396
  %1798 = vmatprep.subr.mxu0 %v1401
  %1799 = vmatpush1.msra.mxu0 %v1400
  %1800 = vmatprep.subr.mxu0 %v1405
  %1801 = vmatpush1.msra.mxu0 %v1404
  %1802 = vmatprep.subr.mxu0 %v1505
  %1803 = vmatpush1.msra.mxu0 %v1504
  %1804 = vmatprep.subr.mxu0 %v1509
  %1805 = vmatpush1.msra.mxu0 %v1508
  %1806 = vmatprep.subr.mxu0 %v1513
  %1807 = vmatpush1.msra.mxu0 %v1512
  %1808 = vmatprep.subr.mxu0 %v1517
  %1809 = vmatpush1.msra.mxu0 %v1516
  %1810 = vmatprep.subr.mxu0 %v1521
  %1811 = vmatpush1.msra.mxu0 %v1520
  %1812 = vmatprep.subr.mxu0 %v1525
  %1813 = vmatpush1.msra.mxu0 %v1524
  %1814 = vmatprep.subr.mxu0 %v1529
  %1815 = vmatpush1.msra.mxu0 %v1528
  %1816 = vmatprep.subr.mxu0 %v1533
  %1817 = vmatpush1.msra.mxu0 %v1532
  %1818 = vmatprep.mubr.f32.mxu0 %v1677
  %1819 = vmatmul.mubr.f32.gmra.mrb[0].mxu0 %v1665
  %v1820 = vpop.f32.mrb[0].mxu0
  %v1821 = vadd.f32 %v1750, %v1820
  %v1822 = vpop.f32.mrb[0].mxu0
  %v1823 = vadd.f32 %v1752, %v1822
  %1824 = vdwg.mxu0
  %1825 = vmatprep.subr.mxu0 %v1633
  %1826 = vmatpush1.msra.mxu0 %v1632
  %1827 = vmatprep.subr.mxu0 %v1637
  %1828 = vmatpush1.msra.mxu0 %v1636
  %1829 = vmatprep.subr.mxu0 %v1641
  %1830 = vmatpush1.msra.mxu0 %v1640
  %1831 = vmatprep.subr.mxu0 %v1645
  %1832 = vmatpush1.msra.mxu0 %v1644
  %1833 = vmatprep.subr.mxu0 %v1649
  %1834 = vmatpush1.msra.mxu0 %v1648
  %1835 = vmatprep.subr.mxu0 %v1653
  %1836 = vmatpush1.msra.mxu0 %v1652
  %1837 = vmatprep.subr.mxu0 %v1657
  %1838 = vmatpush1.msra.mxu0 %v1656
  %1839 = vmatprep.subr.mxu0 %v1661
  %1840 = vmatpush1.msra.mxu0 %v1660
  %1841 = vmatprep.subr.mxu0 0.0
  %1842 = vmatpush1.msra.mxu0 0.0
  %1843 = vmatprep.subr.mxu0 0.0
  %1844 = vmatpush1.msra.mxu0 0.0
  %1845 = vmatprep.subr.mxu0 0.0
  %1846 = vmatpush1.msra.mxu0 0.0
  %1847 = vmatprep.subr.mxu0 0.0
  %1848 = vmatpush1.msra.mxu0 0.0
  %1849 = vmatprep.subr.mxu0 0.0
  %1850 = vmatpush1.msra.mxu0 0.0
  %1851 = vmatprep.subr.mxu0 0.0
  %1852 = vmatpush1.msra.mxu0 0.0
  %1853 = vmatprep.subr.mxu0 0.0
  %1854 = vmatpush1.msra.mxu0 0.0
  %1855 = vmatprep.subr.mxu0 0.0
  %1856 = vmatpush1.msra.mxu0 0.0
  %1857 = vmatprep.subr.mxu0 0.0
  %1858 = vmatpush1.msra.mxu0 0.0
  %1859 = vmatprep.subr.mxu0 0.0
  %1860 = vmatpush1.msra.mxu0 0.0
  %1861 = vmatprep.subr.mxu0 0.0
  %1862 = vmatpush1.msra.mxu0 0.0
  %1863 = vmatprep.subr.mxu0 0.0
  %1864 = vmatpush1.msra.mxu0 0.0
  %1865 = vmatprep.subr.mxu0 0.0
  %1866 = vmatpush1.msra.mxu0 0.0
  %1867 = vmatprep.subr.mxu0 0.0
  %1868 = vmatpush1.msra.mxu0 0.0
  %1869 = vmatprep.subr.mxu0 0.0
  %1870 = vmatpush1.msra.mxu0 0.0
  %1871 = vmatprep.subr.mxu0 0.0
  %1872 = vmatpush1.msra.mxu0 0.0
  %1873 = vmatprep.subr.mxu0 0.0
  %1874 = vmatpush1.msra.mxu0 0.0
  %1875 = vmatprep.subr.mxu0 0.0
  %1876 = vmatpush1.msra.mxu0 0.0
  %1877 = vmatprep.subr.mxu0 0.0
  %1878 = vmatpush1.msra.mxu0 0.0
  %1879 = vmatprep.subr.mxu0 0.0
  %1880 = vmatpush1.msra.mxu0 0.0
  %1881 = vmatprep.subr.mxu0 0.0
  %1882 = vmatpush1.msra.mxu0 0.0
  %1883 = vmatprep.subr.mxu0 0.0
  %1884 = vmatpush1.msra.mxu0 0.0
  %1885 = vmatprep.subr.mxu0 0.0
  %1886 = vmatpush1.msra.mxu0 0.0
  %1887 = vmatprep.subr.mxu0 0.0
  %1888 = vmatpush1.msra.mxu0 0.0
  %1889 = vmatprep.mubr.f32.mxu0 0.0
  %1890 = vmatmul.mubr.f32.gmra.mrb[0].mxu0 %v1681
  %v1891 = vpop.f32.mrb[0].mxu0
  %v1892 = vadd.f32 %v1821, %v1891
  %v1893 = vpop.f32.mrb[0].mxu0
  %v1894 = vadd.f32 %v1823, %v1893
  %1895 = vdwg.mxu0
  %1896 = vmatprep.subr.mxu0 %v739
  %1897 = vmatpush1.msra.mxu0 %v738
  %1898 = vmatprep.subr.mxu0 %v743
  %1899 = vmatpush1.msra.mxu0 %v742
  %1900 = vmatprep.subr.mxu0 %v747
  %1901 = vmatpush1.msra.mxu0 %v746
  %1902 = vmatprep.subr.mxu0 %v751
  %1903 = vmatpush1.msra.mxu0 %v750
  %1904 = vmatprep.subr.mxu0 %v755
  %1905 = vmatpush1.msra.mxu0 %v754
  %1906 = vmatprep.subr.mxu0 %v759
  %1907 = vmatpush1.msra.mxu0 %v758
  %1908 = vmatprep.subr.mxu0 %v763
  %1909 = vmatpush1.msra.mxu0 %v762
  %1910 = vmatprep.subr.mxu0 %v767
  %1911 = vmatpush1.msra.mxu0 %v766
  %1912 = vmatprep.subr.mxu0 %v867
  %1913 = vmatpush1.msra.mxu0 %v866
  %1914 = vmatprep.subr.mxu0 %v871
  %1915 = vmatpush1.msra.mxu0 %v870
  %1916 = vmatprep.subr.mxu0 %v875
  %1917 = vmatpush1.msra.mxu0 %v874
  %1918 = vmatprep.subr.mxu0 %v879
  %1919 = vmatpush1.msra.mxu0 %v878
  %1920 = vmatprep.subr.mxu0 %v883
  %1921 = vmatpush1.msra.mxu0 %v882
  %1922 = vmatprep.subr.mxu0 %v887
  %1923 = vmatpush1.msra.mxu0 %v886
  %1924 = vmatprep.subr.mxu0 %v891
  %1925 = vmatpush1.msra.mxu0 %v890
  %1926 = vmatprep.subr.mxu0 %v895
  %1927 = vmatpush1.msra.mxu0 %v894
  %1928 = vmatprep.subr.mxu0 %v995
  %1929 = vmatpush1.msra.mxu0 %v994
  %1930 = vmatprep.subr.mxu0 %v999
  %1931 = vmatpush1.msra.mxu0 %v998
  %1932 = vmatprep.subr.mxu0 %v1003
  %1933 = vmatpush1.msra.mxu0 %v1002
  %1934 = vmatprep.subr.mxu0 %v1007
  %1935 = vmatpush1.msra.mxu0 %v1006
  %1936 = vmatprep.subr.mxu0 %v1011
  %1937 = vmatpush1.msra.mxu0 %v1010
  %1938 = vmatprep.subr.mxu0 %v1015
  %1939 = vmatpush1.msra.mxu0 %v1014
  %1940 = vmatprep.subr.mxu0 %v1019
  %1941 = vmatpush1.msra.mxu0 %v1018
  %1942 = vmatprep.subr.mxu0 %v1023
  %1943 = vmatpush1.msra.mxu0 %v1022
  %1944 = vmatprep.subr.mxu0 %v1123
  %1945 = vmatpush1.msra.mxu0 %v1122
  %1946 = vmatprep.subr.mxu0 %v1127
  %1947 = vmatpush1.msra.mxu0 %v1126
  %1948 = vmatprep.subr.mxu0 %v1131
  %1949 = vmatpush1.msra.mxu0 %v1130
  %1950 = vmatprep.subr.mxu0 %v1135
  %1951 = vmatpush1.msra.mxu0 %v1134
  %1952 = vmatprep.subr.mxu0 %v1139
  %1953 = vmatpush1.msra.mxu0 %v1138
  %1954 = vmatprep.subr.mxu0 %v1143
  %1955 = vmatpush1.msra.mxu0 %v1142
  %1956 = vmatprep.subr.mxu0 %v1147
  %1957 = vmatpush1.msra.mxu0 %v1146
  %1958 = vmatprep.subr.mxu0 %v1151
  %1959 = vmatpush1.msra.mxu0 %v1150
  %1960 = vmatprep.mubr.f32.mxu0 %v1676
  %1961 = vmatmul.mubr.f32.gmra.mrb[0].mxu0 %v1664
  %v1962 = vpop.f32.mrb[0].mxu0
  %v1963 = vadd.f32 %v1671, %v1962
  %v1964 = vpop.f32.mrb[0].mxu0
  %v1965 = vadd.f32 %v1671, %v1964
  %1966 = vdwg.mxu0
  %1967 = vmatprep.subr.mxu0 %v611
  %1968 = vmatpush1.msra.mxu0 %v610
  %1969 = vmatprep.subr.mxu0 %v615
  %1970 = vmatpush1.msra.mxu0 %v614
  %1971 = vmatprep.subr.mxu0 %v619
  %1972 = vmatpush1.msra.mxu0 %v618
  %1973 = vmatprep.subr.mxu0 %v623
  %1974 = vmatpush1.msra.mxu0 %v622
  %1975 = vmatprep.subr.mxu0 %v627
  %1976 = vmatpush1.msra.mxu0 %v626
  %1977 = vmatprep.subr.mxu0 %v631
  %1978 = vmatpush1.msra.mxu0 %v630
  %1979 = vmatprep.subr.mxu0 %v635
  %1980 = vmatpush1.msra.mxu0 %v634
  %1981 = vmatprep.subr.mxu0 %v639
  %1982 = vmatpush1.msra.mxu0 %v638
  %1983 = vmatprep.subr.mxu0 %v1251
  %1984 = vmatpush1.msra.mxu0 %v1250
  %1985 = vmatprep.subr.mxu0 %v1255
  %1986 = vmatpush1.msra.mxu0 %v1254
  %1987 = vmatprep.subr.mxu0 %v1259
  %1988 = vmatpush1.msra.mxu0 %v1258
  %1989 = vmatprep.subr.mxu0 %v1263
  %1990 = vmatpush1.msra.mxu0 %v1262
  %1991 = vmatprep.subr.mxu0 %v1267
  %1992 = vmatpush1.msra.mxu0 %v1266
  %1993 = vmatprep.subr.mxu0 %v1271
  %1994 = vmatpush1.msra.mxu0 %v1270
  %1995 = vmatprep.subr.mxu0 %v1275
  %1996 = vmatpush1.msra.mxu0 %v1274
  %1997 = vmatprep.subr.mxu0 %v1279
  %1998 = vmatpush1.msra.mxu0 %v1278
  %1999 = vmatprep.subr.mxu0 %v1379
  %2000 = vmatpush1.msra.mxu0 %v1378
  %2001 = vmatprep.subr.mxu0 %v1383
  %2002 = vmatpush1.msra.mxu0 %v1382
  %2003 = vmatprep.subr.mxu0 %v1387
  %2004 = vmatpush1.msra.mxu0 %v1386
  %2005 = vmatprep.subr.mxu0 %v1391
  %2006 = vmatpush1.msra.mxu0 %v1390
  %2007 = vmatprep.subr.mxu0 %v1395
  %2008 = vmatpush1.msra.mxu0 %v1394
  %2009 = vmatprep.subr.mxu0 %v1399
  %2010 = vmatpush1.msra.mxu0 %v1398
  %2011 = vmatprep.subr.mxu0 %v1403
  %2012 = vmatpush1.msra.mxu0 %v1402
  %2013 = vmatprep.subr.mxu0 %v1407
  %2014 = vmatpush1.msra.mxu0 %v1406
  %2015 = vmatprep.subr.mxu0 %v1507
  %2016 = vmatpush1.msra.mxu0 %v1506
  %2017 = vmatprep.subr.mxu0 %v1511
  %2018 = vmatpush1.msra.mxu0 %v1510
  %2019 = vmatprep.subr.mxu0 %v1515
  %2020 = vmatpush1.msra.mxu0 %v1514
  %2021 = vmatprep.subr.mxu0 %v1519
  %2022 = vmatpush1.msra.mxu0 %v1518
  %2023 = vmatprep.subr.mxu0 %v1523
  %2024 = vmatpush1.msra.mxu0 %v1522
  %2025 = vmatprep.subr.mxu0 %v1527
  %2026 = vmatpush1.msra.mxu0 %v1526
  %2027 = vmatprep.subr.mxu0 %v1531
  %2028 = vmatpush1.msra.mxu0 %v1530
  %2029 = vmatprep.subr.mxu0 %v1535
  %2030 = vmatpush1.msra.mxu0 %v1534
  %2031 = vmatprep.mubr.f32.mxu0 %v1677
  %2032 = vmatmul.mubr.f32.gmra.mrb[0].mxu0 %v1665
  %v2033 = vpop.f32.mrb[0].mxu0
  %v2034 = vadd.f32 %v1963, %v2033
  %v2035 = vpop.f32.mrb[0].mxu0
  %v2036 = vadd.f32 %v1965, %v2035
  %2037 = vdwg.mxu0
  %2038 = vmatprep.subr.mxu0 %v1635
  %2039 = vmatpush1.msra.mxu0 %v1634
  %2040 = vmatprep.subr.mxu0 %v1639
  %2041 = vmatpush1.msra.mxu0 %v1638
  %2042 = vmatprep.subr.mxu0 %v1643
  %2043 = vmatpush1.msra.mxu0 %v1642
  %2044 = vmatprep.subr.mxu0 %v1647
  %2045 = vmatpush1.msra.mxu0 %v1646
  %2046 = vmatprep.subr.mxu0 %v1651
  %2047 = vmatpush1.msra.mxu0 %v1650
  %2048 = vmatprep.subr.mxu0 %v1655
  %2049 = vmatpush1.msra.mxu0 %v1654
  %2050 = vmatprep.subr.mxu0 %v1659
  %2051 = vmatpush1.msra.mxu0 %v1658
  %2052 = vmatprep.subr.mxu0 %v1663
  %2053 = vmatpush1.msra.mxu0 %v1662
  %2054 = vmatprep.subr.mxu0 0.0
  %2055 = vmatpush1.msra.mxu0 0.0
  %2056 = vmatprep.subr.mxu0 0.0
  %2057 = vmatpush1.msra.mxu0 0.0
  %2058 = vmatprep.subr.mxu0 0.0
  %2059 = vmatpush1.msra.mxu0 0.0
  %2060 = vmatprep.subr.mxu0 0.0
  %2061 = vmatpush1.msra.mxu0 0.0
  %2062 = vmatprep.subr.mxu0 0.0
  %2063 = vmatpush1.msra.mxu0 0.0
  %2064 = vmatprep.subr.mxu0 0.0
  %2065 = vmatpush1.msra.mxu0 0.0
  %2066 = vmatprep.subr.mxu0 0.0
  %2067 = vmatpush1.msra.mxu0 0.0
  %2068 = vmatprep.subr.mxu0 0.0
  %2069 = vmatpush1.msra.mxu0 0.0
  %2070 = vmatprep.subr.mxu0 0.0
  %2071 = vmatpush1.msra.mxu0 0.0
  %2072 = vmatprep.subr.mxu0 0.0
  %2073 = vmatpush1.msra.mxu0 0.0
  %2074 = vmatprep.subr.mxu0 0.0
  %2075 = vmatpush1.msra.mxu0 0.0
  %2076 = vmatprep.subr.mxu0 0.0
  %2077 = vmatpush1.msra.mxu0 0.0
  %2078 = vmatprep.subr.mxu0 0.0
  %2079 = vmatpush1.msra.mxu0 0.0
  %2080 = vmatprep.subr.mxu0 0.0
  %2081 = vmatpush1.msra.mxu0 0.0
  %2082 = vmatprep.subr.mxu0 0.0
  %2083 = vmatpush1.msra.mxu0 0.0
  %2084 = vmatprep.subr.mxu0 0.0
  %2085 = vmatpush1.msra.mxu0 0.0
  %2086 = vmatprep.subr.mxu0 0.0
  %2087 = vmatpush1.msra.mxu0 0.0
  %2088 = vmatprep.subr.mxu0 0.0
  %2089 = vmatpush1.msra.mxu0 0.0
  %2090 = vmatprep.subr.mxu0 0.0
  %2091 = vmatpush1.msra.mxu0 0.0
  %2092 = vmatprep.subr.mxu0 0.0
  %2093 = vmatpush1.msra.mxu0 0.0
  %2094 = vmatprep.subr.mxu0 0.0
  %2095 = vmatpush1.msra.mxu0 0.0
  %2096 = vmatprep.subr.mxu0 0.0
  %2097 = vmatpush1.msra.mxu0 0.0
  %2098 = vmatprep.subr.mxu0 0.0
  %2099 = vmatpush1.msra.mxu0 0.0
  %2100 = vmatprep.subr.mxu0 0.0
  %2101 = vmatpush1.msra.mxu0 0.0
  %2102 = vmatprep.mubr.f32.mxu0 0.0
  %2103 = vmatmul.mubr.f32.gmra.mrb[0].mxu0 %v1681
  %v2104 = vpop.f32.mrb[0].mxu0
  %v2105 = vadd.f32 %v2034, %v2104
  %v2106 = vpop.f32.mrb[0].mxu0
  %v2107 = vadd.f32 %v2036, %v2106
  %2108 = vdwg.mxu0
  %v2113 = vcombine.low %v1892, %v1894
  %v2114 = vcombine.low %v2105, %v2107
  %2117 = vst [vmem:[%s6] sm:$0x77] %v2113
  %2118 = vst [vmem:[%s6 + $0x8] sm:$0x77] %v2114
  // Predicated region
  $region26: #{generator_forward.1} parent=0 // pred_check
    _
  $region27: #{generator_forward.1} parent=0 // pred_check_branch
    %2120 = sbr.rel (0) target = $region29
  $region28: #{generator_forward.1} parent=0 // pred_region
    _
  $region29: #{generator_forward.1} parent=0 // pred_fallthru
    _
  // Predicated region
  $region30: #{generator_forward.1} parent=0 // pred_check
    _
  $region31: #{generator_forward.1} parent=0 // pred_check_branch
    %2122 = sbr.rel (0) target = $region33
  $region32: #{generator_forward.1} parent=0 // pred_region
    _
  $region33: #{generator_forward.1} parent=0 // pred_fallthru
    _

</llo_original>
